<compile_context>
chip_gen: v7x
topology: tpu7x:2x2x1
jax: 0.10.0
libtpu: 0.0.40
codegen_flags: <defaults>
</compile_context>

<pallas_src>
import functools
import math

import jax
import jax.numpy as jnp
from jax.experimental import pallas as pl
from jax.experimental.pallas import tpu as pltpu

_SHIFT = math.log(2.0)

# Lane-width candidates (largest first -> lane-dense, unmasked full-width vst).
_LANE_CANDIDATES = (4096, 2048, 1024, 512, 256, 128)
# Below this many bytes, a fused XLA elementwise op beats a pallas_call launch.
_FAST_PATH_BYTES = 256 * 1024


@functools.lru_cache(maxsize=1)
def _per_buffer_block_bytes():
    """Per-buffer block byte budget, chosen per TPU generation."""
    try:
        kind = jax.devices()[0].device_kind.lower()
    except Exception:  # pragma: no cover - defensive
        kind = ""
    if "v5" in kind:
        # v5e: ~820 GB/s, per-step overhead already small; 16 MiB scoped default.
        return 2 * 1024 * 1024
    if "v6" in kind:
        # v6e: ~86% of roofline at ~4 MiB tiles; 16 MiB resident < 32 MiB default.
        return 4 * 1024 * 1024
    if "v7" in kind or "7x" in kind:
        # v7x: 3.2 TB/s makes per-step overhead relatively larger; 32 MiB
        # resident still comfortably under the 64 MiB physical VMEM.
        return 8 * 1024 * 1024
    return 4 * 1024 * 1024  # unknown generation: safe middle ground


def _jnp_shifted_softplus(x):
    """Fused XLA fallback (small inputs, odd tails, f64, empty arrays)."""
    return (jnp.logaddexp(x, 0.0) - _SHIFT).astype(x.dtype)


def _shifted_softplus_kernel(x_ref, o_ref):
    x = x_ref[...].astype(jnp.float32)
    # Numerically stable softplus: max(x, 0) + log1p(exp(-|x|)).
    sp = jnp.maximum(x, 0.0) + jnp.log1p(jnp.exp(-jnp.abs(x)))
    o_ref[...] = (sp - _SHIFT).astype(o_ref.dtype)


def _launch_2d(x2):
    """Run the kernel over a lane-dense (rows, lane_w) array."""
    rows, lane_w = x2.shape
    itemsize = jnp.dtype(x2.dtype).itemsize
    # Sublane granularity: 8 for 32-bit, 16 for 16-bit, 32 for 8-bit dtypes.
    sublane = max(8, 32 // max(itemsize, 1))

    block_bytes = _per_buffer_block_bytes()
    tm = (block_bytes // (lane_w * itemsize)) // sublane * sublane
    tm = max(sublane, tm)
    if tm >= rows:
        if rows >= 2 * sublane:
            # Split into >= 2 blocks so v7x's two TensorCores (axis marked
            # "parallel") can share the HBM stream; no-op harm on 1-TC chips.
            half = pl.cdiv(rows, 2)
            tm = ((half + sublane - 1) // sublane) * sublane
        else:
            # Block dim equal to the full array dim is always legal.
            tm = rows
    grid_rows = pl.cdiv(rows, tm)  # ragged last block: Pallas masks OOB writes

    block_vmem = tm * lane_w * itemsize
    # in + out, double-buffered (4 buffers) + headroom; capped for v7x (64 MiB
    # physical) and explicitly above v5e's 16 MiB scoped default.
    vmem_limit = int(min(max(32 * 1024 * 1024, 4 * block_vmem + 8 * 1024 * 1024),
                         48 * 1024 * 1024))

    total = rows * lane_w
    return pl.pallas_call(
        _shifted_softplus_kernel,
        out_shape=jax.ShapeDtypeStruct((rows, lane_w), x2.dtype),
        grid_spec=pltpu.PrefetchScalarGridSpec(
            num_scalar_prefetch=0,
            grid=(grid_rows,),
            in_specs=[pl.BlockSpec((tm, lane_w), lambda i: (i, 0))],
            out_specs=pl.BlockSpec((tm, lane_w), lambda i: (i, 0)),
        ),
        compiler_params=pltpu.CompilerParams(
            dimension_semantics=("parallel",),
            vmem_limit_bytes=vmem_limit,
        ),
        cost_estimate=pl.CostEstimate(
            flops=4 * total,
            transcendentals=2 * total,      # exp + log1p per element
            bytes_accessed=2 * total * itemsize,
        ),
    )(x2)


def shifted_softplus(x):
    x = jnp.asarray(x)
    orig_shape = x.shape
    total = int(x.size)

    # Fast path: empty, float64 (keep full precision via XLA), or tiny inputs
    # where pallas_call launch + pipeline prologue/epilogue dominates.
    if (total == 0
            or x.dtype == jnp.float64
            or total * jnp.dtype(x.dtype).itemsize < _FAST_PATH_BYTES):
        return _jnp_shifted_softplus(x)

    flat = x.reshape(-1)  # contiguous reshape: free plumbing, no copy

    lane_w = None
    for cand in _LANE_CANDIDATES:
        if total % cand == 0:
            lane_w = cand
            break

    if lane_w is not None:
        out = _launch_2d(flat.reshape(total // lane_w, lane_w))
        return out.reshape(orig_shape)

    # total not a multiple of 128: kernel on the 128-aligned prefix, plain jnp
    # (XLA-fused) on the <128-element tail.  No full-array pad / slice copies.
    main = (total // 128) * 128  # >= 128 here (we are above the fast-path size)
    lane_w = 128
    for cand in _LANE_CANDIDATES:
        if main % cand == 0:
            lane_w = cand
            break
    head = _launch_2d(flat[:main].reshape(main // lane_w, lane_w)).reshape(-1)
    tail = _jnp_shifted_softplus(flat[main:])
    return jnp.concatenate([head, tail]).reshape(orig_shape)


def _reference(x):
    xf = x.astype(jnp.float32)
    return (jnp.logaddexp(xf, 0.0) - _SHIFT).astype(x.dtype)


if __name__ == "__main__":
    key = jax.random.PRNGKey(0)
    k0, k1, k2, k3 = jax.random.split(key, 4)

    # Shape consistent with a generic activation (batch=2, ch=4, 16x16).
    # 8 KB -> exercises the small-input fast path.
    x = jax.random.normal(k0, (2, 4, 16, 16), dtype=jnp.float32) * 5.0
    y = jax.block_until_ready(shifted_softplus(x))
    assert y.shape == x.shape and y.dtype == x.dtype
    assert jnp.allclose(y, _reference(x), atol=1e-5, rtol=1e-5)

    # 1 MiB f32 -> exercises the Pallas kernel path (lane_w=4096, >=2 blocks).
    x_big = jax.random.normal(k1, (256, 1024), dtype=jnp.float32) * 5.0
    y_big = jax.block_until_ready(shifted_softplus(x_big))
    assert y_big.shape == x_big.shape and y_big.dtype == x_big.dtype
    assert jnp.allclose(y_big, _reference(x_big), atol=1e-5, rtol=1e-5)

    # Large odd element count (total % 128 != 0) -> prefix kernel + jnp tail.
    x_odd = jax.random.normal(k2, (515, 1031), dtype=jnp.float32) * 3.0
    y_odd = jax.block_until_ready(shifted_softplus(x_odd))
    assert y_odd.shape == x_odd.shape and y_odd.dtype == x_odd.dtype
    assert jnp.allclose(y_odd, _reference(x_odd), atol=1e-5, rtol=1e-5)

    # bf16 through the kernel (computed in f32 inside, cast back to bf16).
    x_bf = (jax.random.normal(k3, (256, 2048), dtype=jnp.float32) * 5.0
            ).astype(jnp.bfloat16)
    y_bf = jax.block_until_ready(shifted_softplus(x_bf))
    assert y_bf.shape == x_bf.shape and y_bf.dtype == jnp.bfloat16
    assert jnp.allclose(y_bf.astype(jnp.float32),
                        _reference(x_bf).astype(jnp.float32),
                        atol=2e-2, rtol=2e-2)

    print("KERNEL_OK")
</pallas_src>

<mosaic_0001>
module attributes {stable_mosaic.version = 11 : i64} {
  func.func @_shifted_softplus_kernel(%arg0: i32, %arg1: memref<32x4096xf32, #tpu.memory_space<vmem>>, %arg2: memref<32x4096xf32, #tpu.memory_space<vmem>>) attributes {dimension_semantics = [#tpu.dimension_semantics<parallel>], iteration_bounds = array<i64: 2>, scalar_prefetch = 0 : i64, scratch_operands = 0 : i64, tpu.core_type = #tpu.core_type<tc>, window_params = [{transform_indices = @transform_0, window_bounds = array<i64: 32, 4096>}, {transform_indices = @transform_1, window_bounds = array<i64: 32, 4096>}]} {
    %c0 = arith.constant 0 : index
    %c0_0 = arith.constant 0 : index
    %0 = vector.load %arg1[%c0, %c0_0] : memref<32x4096xf32, #tpu.memory_space<vmem>>, vector<32x4096xf32>
    %cst = arith.constant 0.000000e+00 : f32
    %1 = vector.broadcast %cst : f32 to vector<32x4096xf32>
    %2 = arith.maximumf %0, %1 : vector<32x4096xf32>
    %3 = math.absf %0 : vector<32x4096xf32>
    %cst_1 = arith.constant 0.000000e+00 : f32
    %4 = vector.broadcast %cst_1 : f32 to vector<32x4096xf32>
    %5 = arith.subf %4, %3 : vector<32x4096xf32>
    %6 = math.exp %5 : vector<32x4096xf32>
    %7 = math.log1p %6 : vector<32x4096xf32>
    %8 = arith.addf %2, %7 : vector<32x4096xf32>
    %cst_2 = arith.constant 0.693147182 : f32
    %9 = vector.broadcast %cst_2 : f32 to vector<32x4096xf32>
    %10 = arith.subf %8, %9 : vector<32x4096xf32>
    %c0_3 = arith.constant 0 : index
    %c0_4 = arith.constant 0 : index
    %11 = vector.load %arg2[%c0_3, %c0_4] : memref<32x4096xf32, #tpu.memory_space<vmem>>, vector<32x4096xf32>
    tpu.vector_store %arg2[%c0_3, %c0_4], %10 {strides = array<i32>} : memref<32x4096xf32, #tpu.memory_space<vmem>>, vector<32x4096xf32>,
    return
  }
  func.func @transform_0(%arg0: i32) -> (i32, i32) {
    %c0_i32 = arith.constant 0 : i32
    %c0_i32_0 = arith.constant 0 : i32
    return %arg0, %c0_i32 : i32, i32
  }
  func.func @transform_1(%arg0: i32) -> (i32, i32) {
    %c0_i32 = arith.constant 0 : i32
    %c0_i32_0 = arith.constant 0 : i32
    return %arg0, %c0_i32 : i32, i32
  }
}

</mosaic_0001>

<llo_original>
// kernel: tpu_custom_call.1
$region0: #{tpu_custom_call.1}
  #allocation0 [shape = 'u32[]', space=smem, size = 0x4, offset = 0x4, fixed_abs, tag = 'smem constant byte address 0x4 - core index']
  #allocation1 [shape = 'u32[144,128]{1,0:T(1,128)}', space=vmem, size = 0x12000, scoped, tag = 'internal scratch']
  %s0 = inlined_call_operand.hbm [shape: f32[64,4096], index: 0, kind: input, shape index: {}]
  %s1 = inlined_call_operand.hbm [shape: f32[64,4096], index: 1, kind: output, shape index: {}]
  %s2 = sld [smem:[#allocation0]]
  $region41: #{tpu_custom_call.1} parent=0
    _
  %s4 = ssub.s32 1, %s2
  %s5 = scalar_select 0, %s4, %s2
  $region1: #{tpu_custom_call.1} parent=0
    #allocation2 [shape = 'u8[1048576]{0}', space=vmem, size = 0x100000, scoped, tag = 'input window, operand 0']
    #allocation3 [shape = 's32[2]{0}', space=sflag, size = 0x8, scoped, tag = 'scoped memory for tpu_custom_call.1']
    #allocation4 [shape = 's32[2]{0}', space=sflag, size = 0x8, scoped, tag = 'scoped memory for tpu_custom_call.1']
    #allocation5 [shape = 'u8[1048576]{0}', space=vmem, size = 0x100000, scoped, tag = 'output window, operand 0']
    %6 = vsyncpa [#allocation3], 0
    %s7 = scalar_lea.sflag [#allocation3], 1
    %8 = vsyncpa %s7, 0
    %9 = vsyncpa [#allocation4], 0
    %s10 = scalar_lea.sflag [#allocation4], 1
    %11 = vsyncpa %s10, 0
    loop: start=0, step=1, limit=4
    $region2: #{tpu_custom_call.1} parent=1 // loop_pre_header
      _
    $region3: #{tpu_custom_call.1} parent=1 // loop_header
      %s13 = sphi 0, %s17
      %p14 = scmp.ge.s32.totalorder %s13, 4
      %s23 = sphi 0, %s25
      %s26 = sphi 0, %s23
      %s27 = sphi 0, %s26
      %s43 = sphi 0, %s27
      %s49 = sphi 0, %s51
      %s52 = sphi 0, %s49
      %s53 = sphi 0, %s52
      %s69 = sphi 0, %s53
    $region4: #{tpu_custom_call.1} parent=1 // loop_header_branch
      %16 = sbr.rel (%p14) target = $region8
    $region5: #{tpu_custom_call.1} parent=1 // loop_body
      %s18 = ssub.s32 %s13, 1
      %s19 = ssub.s32 %s13, 2
      %s20 = sadd.s32 %s13, 1
      %s21 = ssub.s32 %s13, %s20
      %p22 = scmp.eq.s32.totalorder %s21, 0
      %s24 = sadd.s32 %s23, 1
      %s25 = scalar_select %p22, %s23, %s24
      %p28 = pneg %p22
      %p29 = scmp.eq.s32.totalorder %s13, 1
      %p30 = por %p28, %p29
      %p31 = scmp.ne.s32.totalorder %s23, %s26
      %p32 = scmp.eq.s32.totalorder %s13, 0
      %p33 = por %p31, %p32
      %p34 = scmp.ne.s32.totalorder %s23, %s26
      %p35 = scmp.eq.s32.totalorder %s18, 1
      %p36 = por %p34, %p35
      %p37 = scmp.ne.s32.totalorder %s26, %s27
      %p38 = scmp.eq.s32.totalorder %s18, 0
      %p39 = por %p37, %p38
      %p40 = scmp.ne.s32.totalorder %s26, %s27
      %p41 = scmp.eq.s32.totalorder %s19, 1
      %p42 = por %p40, %p41
      %p44 = scmp.ne.s32.totalorder %s27, %s43
      %p45 = scmp.eq.s32.totalorder %s19, 0
      %p46 = por %p44, %p45
      %s47 = ssub.s32 %s13, %s20
      %p48 = scmp.eq.s32.totalorder %s47, 0
      %s50 = sadd.s32 %s49, 1
      %s51 = scalar_select %p48, %s49, %s50
      %p54 = pneg %p48
      %p55 = scmp.eq.s32.totalorder %s13, 1
      %p56 = por %p54, %p55
      %p57 = scmp.ne.s32.totalorder %s49, %s52
      %p58 = scmp.eq.s32.totalorder %s13, 0
      %p59 = por %p57, %p58
      %p60 = scmp.ne.s32.totalorder %s49, %s52
      %p61 = scmp.eq.s32.totalorder %s18, 1
      %p62 = por %p60, %p61
      %p63 = scmp.ne.s32.totalorder %s52, %s53
      %p64 = scmp.eq.s32.totalorder %s18, 0
      %p65 = por %p63, %p64
      %p66 = scmp.ne.s32.totalorder %s52, %s53
      %p67 = scmp.eq.s32.totalorder %s19, 1
      %p68 = por %p66, %p67
      %p70 = scmp.ne.s32.totalorder %s53, %s69
      %p71 = scmp.eq.s32.totalorder %s19, 0
      %p72 = por %p70, %p71
      %p73 = scmp.le.s32.totalorder 1, %s13
      %p74 = scmp.lt.s32.totalorder %s13, 3
      %p75 = pnand %p73, %p74
      %p76 = pneg %p75
      // Predicated region
      $region9: #{tpu_custom_call.1} parent=5 // pred_check
        _
      $region10: #{tpu_custom_call.1} parent=5 // pred_check_branch
        %78 = sbr.rel (%p75) target = $region12
      $region11: #{tpu_custom_call.1} parent=5 // pred_region
        %s79 = ssub.s32 %s13, 1
      $region12: #{tpu_custom_call.1} parent=5 // pred_fallthru
        _
      %p80 = scmp.lt.s32.totalorder %s13, 2
      // Predicated region
      $region13: #{tpu_custom_call.1} parent=5 // pred_check
        %p81 = pneg %p80
      $region14: #{tpu_custom_call.1} parent=5 // pred_check_branch
        %83 = sbr.rel (%p81) target = $region16
      $region15: #{tpu_custom_call.1} parent=5 // pred_region
        // Predicated region
        $region17: #{tpu_custom_call.1} parent=15 // pred_check
          %p84 = pneg %p33
        $region18: #{tpu_custom_call.1} parent=15 // pred_check_branch
          %86 = sbr.rel (%p84) target = $region20
        $region19: #{tpu_custom_call.1} parent=15 // pred_region
          %s87 = sand.u32 %s23, 1
          %s88 = scalar_lea.sflag [#allocation3], %s87
          %s89 = sand.u32 %s23, 1
          %s90 = smul.addr %s89, 1024
          %s91 = scalar_lea.vmem [#allocation2], %s90
          %s92 = smul.u32 4, %s13
          %s94 = ssub.s32 16384, 16384
          %95 = vsyncadd %s88, %s94
          %s96 = smul.addr %s92, 32
          %s97 = smul.addr %s96, 128
          %s98 = scalar_lea.hbm %s0, %s97
          %s99 = sshll.u32 %s91, 4
          %s100 = int_to_ptr.vmem [resolvable:$true] %s99
          %105 = dma.hbm_to_vmem [thread:$0]  %s98, 16384, %s100, %s88, 4096, 4096, 256
        $region20: #{tpu_custom_call.1} parent=15 // pred_fallthru
          _
      $region16: #{tpu_custom_call.1} parent=5 // pred_fallthru
        _
      %p106 = scmp.le.s32.totalorder 1, %s13
      %p107 = scmp.lt.s32.totalorder %s13, 3
      %p108 = pnand %p106, %p107
      %p109 = pneg %p108
      // Predicated region
      $region21: #{tpu_custom_call.1} parent=5 // pred_check
        _
      $region22: #{tpu_custom_call.1} parent=5 // pred_check_branch
        %111 = sbr.rel (%p108) target = $region24
      $region23: #{tpu_custom_call.1} parent=5 // pred_region
        %s112 = ssub.s32 %s13, 1
        %s113 = sand.u32 %s26, 1
        %s114 = scalar_lea.sflag [#allocation3], %s113
        %s115 = sand.u32 %s26, 1
        %s116 = smul.addr %s115, 1024
        %s117 = scalar_lea.vmem [#allocation2], %s116
        // Predicated region
        $region25: #{tpu_custom_call.1} parent=23 // pred_check
          %p118 = pneg %p39
        $region26: #{tpu_custom_call.1} parent=23 // pred_check_branch
          %120 = sbr.rel (%p118) target = $region28
        $region27: #{tpu_custom_call.1} parent=23 // pred_region
          %121 = dma.done %s114, 16384
        $region28: #{tpu_custom_call.1} parent=23 // pred_fallthru
          _
        %s122 = sand.u32 %s26, 1
        %s123 = scalar_lea.sflag [#allocation3], %s122
        %s124 = sand.u32 %s26, 1
        %s125 = smul.addr %s124, 1024
        %s126 = scalar_lea.vmem [#allocation2], %s125
        %p127 = pneg %p39
        %p128 = pneg %p36
        %p129 = pneg %p65
        %p130 = pneg %p62
        %s131 = sand.u32 %s52, 1
        %s132 = scalar_lea.sflag [#allocation4], %s131
        %s133 = sand.u32 %s52, 1
        %s134 = smul.addr %s133, 1024
        %s135 = scalar_lea.vmem [#allocation5], %s134
        %s136 = smul.u32 4, %s18
        %s137 = smul.u32 4, %s18
        %v138 = vld [vmem:[%s117] sm:$0xff]
        %v139 = vld [vmem:[%s117 + $0x8] sm:$0xff]
        %v140 = vld [vmem:[%s117 + $0x10] sm:$0xff]
        %v141 = vld [vmem:[%s117 + $0x18] sm:$0xff]
        %v142 = vld [vmem:[%s117 + $0x20] sm:$0xff]
        %v143 = vld [vmem:[%s117 + $0x28] sm:$0xff]
        %v144 = vld [vmem:[%s117 + $0x30] sm:$0xff]
        %v145 = vld [vmem:[%s117 + $0x38] sm:$0xff]
        %v146 = vld [vmem:[%s117 + $0x40] sm:$0xff]
        %v147 = vld [vmem:[%s117 + $0x48] sm:$0xff]
        %v148 = vld [vmem:[%s117 + $0x50] sm:$0xff]
        %v149 = vld [vmem:[%s117 + $0x58] sm:$0xff]
        %v150 = vld [vmem:[%s117 + $0x60] sm:$0xff]
        %v151 = vld [vmem:[%s117 + $0x68] sm:$0xff]
        %v152 = vld [vmem:[%s117 + $0x70] sm:$0xff]
        %v153 = vld [vmem:[%s117 + $0x78] sm:$0xff]
        %v154 = vld [vmem:[%s117 + $0x80] sm:$0xff]
        %v155 = vld [vmem:[%s117 + $0x88] sm:$0xff]
        %v156 = vld [vmem:[%s117 + $0x90] sm:$0xff]
        %v157 = vld [vmem:[%s117 + $0x98] sm:$0xff]
        %v158 = vld [vmem:[%s117 + $0xa0] sm:$0xff]
        %v159 = vld [vmem:[%s117 + $0xa8] sm:$0xff]
        %v160 = vld [vmem:[%s117 + $0xb0] sm:$0xff]
        %v161 = vld [vmem:[%s117 + $0xb8] sm:$0xff]
        %v162 = vld [vmem:[%s117 + $0xc0] sm:$0xff]
        %v163 = vld [vmem:[%s117 + $0xc8] sm:$0xff]
        %v164 = vld [vmem:[%s117 + $0xd0] sm:$0xff]
        %v165 = vld [vmem:[%s117 + $0xd8] sm:$0xff]
        %v166 = vld [vmem:[%s117 + $0xe0] sm:$0xff]
        %v167 = vld [vmem:[%s117 + $0xe8] sm:$0xff]
        %v168 = vld [vmem:[%s117 + $0xf0] sm:$0xff]
        %v169 = vld [vmem:[%s117 + $0xf8] sm:$0xff]
        %v170 = vld [vmem:[%s117 + $0x100] sm:$0xff]
        %v171 = vld [vmem:[%s117 + $0x108] sm:$0xff]
        %v172 = vld [vmem:[%s117 + $0x110] sm:$0xff]
        %v173 = vld [vmem:[%s117 + $0x118] sm:$0xff]
        %v174 = vld [vmem:[%s117 + $0x120] sm:$0xff]
        %v175 = vld [vmem:[%s117 + $0x128] sm:$0xff]
        %v176 = vld [vmem:[%s117 + $0x130] sm:$0xff]
        %v177 = vld [vmem:[%s117 + $0x138] sm:$0xff]
        %v178 = vld [vmem:[%s117 + $0x140] sm:$0xff]
        %v179 = vld [vmem:[%s117 + $0x148] sm:$0xff]
        %v180 = vld [vmem:[%s117 + $0x150] sm:$0xff]
        %v181 = vld [vmem:[%s117 + $0x158] sm:$0xff]
        %v182 = vld [vmem:[%s117 + $0x160] sm:$0xff]
        %v183 = vld [vmem:[%s117 + $0x168] sm:$0xff]
        %v184 = vld [vmem:[%s117 + $0x170] sm:$0xff]
        %v185 = vld [vmem:[%s117 + $0x178] sm:$0xff]
        %v186 = vld [vmem:[%s117 + $0x180] sm:$0xff]
        %v187 = vld [vmem:[%s117 + $0x188] sm:$0xff]
        %v188 = vld [vmem:[%s117 + $0x190] sm:$0xff]
        %v189 = vld [vmem:[%s117 + $0x198] sm:$0xff]
        %v190 = vld [vmem:[%s117 + $0x1a0] sm:$0xff]
        %v191 = vld [vmem:[%s117 + $0x1a8] sm:$0xff]
        %v192 = vld [vmem:[%s117 + $0x1b0] sm:$0xff]
        %v193 = vld [vmem:[%s117 + $0x1b8] sm:$0xff]
        %v194 = vld [vmem:[%s117 + $0x1c0] sm:$0xff]
        %v195 = vld [vmem:[%s117 + $0x1c8] sm:$0xff]
        %v196 = vld [vmem:[%s117 + $0x1d0] sm:$0xff]
        %v197 = vld [vmem:[%s117 + $0x1d8] sm:$0xff]
        %v198 = vld [vmem:[%s117 + $0x1e0] sm:$0xff]
        %v199 = vld [vmem:[%s117 + $0x1e8] sm:$0xff]
        %v200 = vld [vmem:[%s117 + $0x1f0] sm:$0xff]
        %v201 = vld [vmem:[%s117 + $0x1f8] sm:$0xff]
        %v202 = vld [vmem:[%s117 + $0x200] sm:$0xff]
        %v203 = vld [vmem:[%s117 + $0x208] sm:$0xff]
        %v204 = vld [vmem:[%s117 + $0x210] sm:$0xff]
        %v205 = vld [vmem:[%s117 + $0x218] sm:$0xff]
        %v206 = vld [vmem:[%s117 + $0x220] sm:$0xff]
        %v207 = vld [vmem:[%s117 + $0x228] sm:$0xff]
        %v208 = vld [vmem:[%s117 + $0x230] sm:$0xff]
        %v209 = vld [vmem:[%s117 + $0x238] sm:$0xff]
        %v210 = vld [vmem:[%s117 + $0x240] sm:$0xff]
        %v211 = vld [vmem:[%s117 + $0x248] sm:$0xff]
        %v212 = vld [vmem:[%s117 + $0x250] sm:$0xff]
        %v213 = vld [vmem:[%s117 + $0x258] sm:$0xff]
        %v214 = vld [vmem:[%s117 + $0x260] sm:$0xff]
        %v215 = vld [vmem:[%s117 + $0x268] sm:$0xff]
        %v216 = vld [vmem:[%s117 + $0x270] sm:$0xff]
        %v217 = vld [vmem:[%s117 + $0x278] sm:$0xff]
        %v218 = vld [vmem:[%s117 + $0x280] sm:$0xff]
        %v219 = vld [vmem:[%s117 + $0x288] sm:$0xff]
        %v220 = vld [vmem:[%s117 + $0x290] sm:$0xff]
        %v221 = vld [vmem:[%s117 + $0x298] sm:$0xff]
        %v222 = vld [vmem:[%s117 + $0x2a0] sm:$0xff]
        %v223 = vld [vmem:[%s117 + $0x2a8] sm:$0xff]
        %v224 = vld [vmem:[%s117 + $0x2b0] sm:$0xff]
        %v225 = vld [vmem:[%s117 + $0x2b8] sm:$0xff]
        %v226 = vld [vmem:[%s117 + $0x2c0] sm:$0xff]
        %v227 = vld [vmem:[%s117 + $0x2c8] sm:$0xff]
        %v228 = vld [vmem:[%s117 + $0x2d0] sm:$0xff]
        %v229 = vld [vmem:[%s117 + $0x2d8] sm:$0xff]
        %v230 = vld [vmem:[%s117 + $0x2e0] sm:$0xff]
        %v231 = vld [vmem:[%s117 + $0x2e8] sm:$0xff]
        %v232 = vld [vmem:[%s117 + $0x2f0] sm:$0xff]
        %v233 = vld [vmem:[%s117 + $0x2f8] sm:$0xff]
        %v234 = vld [vmem:[%s117 + $0x300] sm:$0xff]
        %v235 = vld [vmem:[%s117 + $0x308] sm:$0xff]
        %v236 = vld [vmem:[%s117 + $0x310] sm:$0xff]
        %v237 = vld [vmem:[%s117 + $0x318] sm:$0xff]
        %v238 = vld [vmem:[%s117 + $0x320] sm:$0xff]
        %v239 = vld [vmem:[%s117 + $0x328] sm:$0xff]
        %v240 = vld [vmem:[%s117 + $0x330] sm:$0xff]
        %v241 = vld [vmem:[%s117 + $0x338] sm:$0xff]
        %v242 = vld [vmem:[%s117 + $0x340] sm:$0xff]
        %v243 = vld [vmem:[%s117 + $0x348] sm:$0xff]
        %v244 = vld [vmem:[%s117 + $0x350] sm:$0xff]
        %v245 = vld [vmem:[%s117 + $0x358] sm:$0xff]
        %v246 = vld [vmem:[%s117 + $0x360] sm:$0xff]
        %v247 = vld [vmem:[%s117 + $0x368] sm:$0xff]
        %v248 = vld [vmem:[%s117 + $0x370] sm:$0xff]
        %v249 = vld [vmem:[%s117 + $0x378] sm:$0xff]
        %v250 = vld [vmem:[%s117 + $0x380] sm:$0xff]
        %v251 = vld [vmem:[%s117 + $0x388] sm:$0xff]
        %v252 = vld [vmem:[%s117 + $0x390] sm:$0xff]
        %v253 = vld [vmem:[%s117 + $0x398] sm:$0xff]
        %v254 = vld [vmem:[%s117 + $0x3a0] sm:$0xff]
        %v255 = vld [vmem:[%s117 + $0x3a8] sm:$0xff]
        %v256 = vld [vmem:[%s117 + $0x3b0] sm:$0xff]
        %v257 = vld [vmem:[%s117 + $0x3b8] sm:$0xff]
        %v258 = vld [vmem:[%s117 + $0x3c0] sm:$0xff]
        %v259 = vld [vmem:[%s117 + $0x3c8] sm:$0xff]
        %v260 = vld [vmem:[%s117 + $0x3d0] sm:$0xff]
        %v261 = vld [vmem:[%s117 + $0x3d8] sm:$0xff]
        %v262 = vld [vmem:[%s117 + $0x3e0] sm:$0xff]
        %v263 = vld [vmem:[%s117 + $0x3e8] sm:$0xff]
        %v264 = vld [vmem:[%s117 + $0x3f0] sm:$0xff]
        %v265 = vld [vmem:[%s117 + $0x3f8] sm:$0xff]
        %v266 = vmax.f32 %v138, 0.0
        %v267 = vmax.f32 %v139, 0.0
        %v268 = vmax.f32 %v140, 0.0
        %v269 = vmax.f32 %v141, 0.0
        %v270 = vmax.f32 %v142, 0.0
        %v271 = vmax.f32 %v143, 0.0
        %v272 = vmax.f32 %v144, 0.0
        %v273 = vmax.f32 %v145, 0.0
        %v274 = vmax.f32 %v146, 0.0
        %v275 = vmax.f32 %v147, 0.0
        %v276 = vmax.f32 %v148, 0.0
        %v277 = vmax.f32 %v149, 0.0
        %v278 = vmax.f32 %v150, 0.0
        %v279 = vmax.f32 %v151, 0.0
        %v280 = vmax.f32 %v152, 0.0
        %v281 = vmax.f32 %v153, 0.0
        %v282 = vmax.f32 %v154, 0.0
        %v283 = vmax.f32 %v155, 0.0
        %v284 = vmax.f32 %v156, 0.0
        %v285 = vmax.f32 %v157, 0.0
        %v286 = vmax.f32 %v158, 0.0
        %v287 = vmax.f32 %v159, 0.0
        %v288 = vmax.f32 %v160, 0.0
        %v289 = vmax.f32 %v161, 0.0
        %v290 = vmax.f32 %v162, 0.0
        %v291 = vmax.f32 %v163, 0.0
        %v292 = vmax.f32 %v164, 0.0
        %v293 = vmax.f32 %v165, 0.0
        %v294 = vmax.f32 %v166, 0.0
        %v295 = vmax.f32 %v167, 0.0
        %v296 = vmax.f32 %v168, 0.0
        %v297 = vmax.f32 %v169, 0.0
        %v298 = vmax.f32 %v170, 0.0
        %v299 = vmax.f32 %v171, 0.0
        %v300 = vmax.f32 %v172, 0.0
        %v301 = vmax.f32 %v173, 0.0
        %v302 = vmax.f32 %v174, 0.0
        %v303 = vmax.f32 %v175, 0.0
        %v304 = vmax.f32 %v176, 0.0
        %v305 = vmax.f32 %v177, 0.0
        %v306 = vmax.f32 %v178, 0.0
        %v307 = vmax.f32 %v179, 0.0
        %v308 = vmax.f32 %v180, 0.0
        %v309 = vmax.f32 %v181, 0.0
        %v310 = vmax.f32 %v182, 0.0
        %v311 = vmax.f32 %v183, 0.0
        %v312 = vmax.f32 %v184, 0.0
        %v313 = vmax.f32 %v185, 0.0
        %v314 = vmax.f32 %v186, 0.0
        %v315 = vmax.f32 %v187, 0.0
        %v316 = vmax.f32 %v188, 0.0
        %v317 = vmax.f32 %v189, 0.0
        %v318 = vmax.f32 %v190, 0.0
        %v319 = vmax.f32 %v191, 0.0
        %v320 = vmax.f32 %v192, 0.0
        %v321 = vmax.f32 %v193, 0.0
        %v322 = vmax.f32 %v194, 0.0
        %v323 = vmax.f32 %v195, 0.0
        %v324 = vmax.f32 %v196, 0.0
        %v325 = vmax.f32 %v197, 0.0
        %v326 = vmax.f32 %v198, 0.0
        %v327 = vmax.f32 %v199, 0.0
        %v328 = vmax.f32 %v200, 0.0
        %v329 = vmax.f32 %v201, 0.0
        %v330 = vmax.f32 %v202, 0.0
        %v331 = vmax.f32 %v203, 0.0
        %v332 = vmax.f32 %v204, 0.0
        %v333 = vmax.f32 %v205, 0.0
        %v334 = vmax.f32 %v206, 0.0
        %v335 = vmax.f32 %v207, 0.0
        %v336 = vmax.f32 %v208, 0.0
        %v337 = vmax.f32 %v209, 0.0
        %v338 = vmax.f32 %v210, 0.0
        %v339 = vmax.f32 %v211, 0.0
        %v340 = vmax.f32 %v212, 0.0
        %v341 = vmax.f32 %v213, 0.0
        %v342 = vmax.f32 %v214, 0.0
        %v343 = vmax.f32 %v215, 0.0
        %v344 = vmax.f32 %v216, 0.0
        %v345 = vmax.f32 %v217, 0.0
        %v346 = vmax.f32 %v218, 0.0
        %v347 = vmax.f32 %v219, 0.0
        %v348 = vmax.f32 %v220, 0.0
        %v349 = vmax.f32 %v221, 0.0
        %v350 = vmax.f32 %v222, 0.0
        %v351 = vmax.f32 %v223, 0.0
        %v352 = vmax.f32 %v224, 0.0
        %v353 = vmax.f32 %v225, 0.0
        %v354 = vmax.f32 %v226, 0.0
        %v355 = vmax.f32 %v227, 0.0
        %v356 = vmax.f32 %v228, 0.0
        %v357 = vmax.f32 %v229, 0.0
        %v358 = vmax.f32 %v230, 0.0
        %v359 = vmax.f32 %v231, 0.0
        %v360 = vmax.f32 %v232, 0.0
        %v361 = vmax.f32 %v233, 0.0
        %v362 = vmax.f32 %v234, 0.0
        %v363 = vmax.f32 %v235, 0.0
        %v364 = vmax.f32 %v236, 0.0
        %v365 = vmax.f32 %v237, 0.0
        %v366 = vmax.f32 %v238, 0.0
        %v367 = vmax.f32 %v239, 0.0
        %v368 = vmax.f32 %v240, 0.0
        %v369 = vmax.f32 %v241, 0.0
        %v370 = vmax.f32 %v242, 0.0
        %v371 = vmax.f32 %v243, 0.0
        %v372 = vmax.f32 %v244, 0.0
        %v373 = vmax.f32 %v245, 0.0
        %v374 = vmax.f32 %v246, 0.0
        %v375 = vmax.f32 %v247, 0.0
        %v376 = vmax.f32 %v248, 0.0
        %v377 = vmax.f32 %v249, 0.0
        %v378 = vmax.f32 %v250, 0.0
        %v379 = vmax.f32 %v251, 0.0
        %v380 = vmax.f32 %v252, 0.0
        %v381 = vmax.f32 %v253, 0.0
        %v382 = vmax.f32 %v254, 0.0
        %v383 = vmax.f32 %v255, 0.0
        %v384 = vmax.f32 %v256, 0.0
        %v385 = vmax.f32 %v257, 0.0
        %v386 = vmax.f32 %v258, 0.0
        %v387 = vmax.f32 %v259, 0.0
        %v388 = vmax.f32 %v260, 0.0
        %v389 = vmax.f32 %v261, 0.0
        %v390 = vmax.f32 %v262, 0.0
        %v391 = vmax.f32 %v263, 0.0
        %v392 = vmax.f32 %v264, 0.0
        %v393 = vmax.f32 %v265, 0.0
        %v394 = vand.u32 2147483647, %v138
        %v395 = vand.u32 2147483647, %v139
        %v396 = vand.u32 2147483647, %v140
        %v397 = vand.u32 2147483647, %v141
        %v398 = vand.u32 2147483647, %v142
        %v399 = vand.u32 2147483647, %v143
        %v400 = vand.u32 2147483647, %v144
        %v401 = vand.u32 2147483647, %v145
        %v402 = vand.u32 2147483647, %v146
        %v403 = vand.u32 2147483647, %v147
        %v404 = vand.u32 2147483647, %v148
        %v405 = vand.u32 2147483647, %v149
        %v406 = vand.u32 2147483647, %v150
        %v407 = vand.u32 2147483647, %v151
        %v408 = vand.u32 2147483647, %v152
        %v409 = vand.u32 2147483647, %v153
        %v410 = vand.u32 2147483647, %v154
        %v411 = vand.u32 2147483647, %v155
        %v412 = vand.u32 2147483647, %v156
        %v413 = vand.u32 2147483647, %v157
        %v414 = vand.u32 2147483647, %v158
        %v415 = vand.u32 2147483647, %v159
        %v416 = vand.u32 2147483647, %v160
        %v417 = vand.u32 2147483647, %v161
        %v418 = vand.u32 2147483647, %v162
        %v419 = vand.u32 2147483647, %v163
        %v420 = vand.u32 2147483647, %v164
        %v421 = vand.u32 2147483647, %v165
        %v422 = vand.u32 2147483647, %v166
        %v423 = vand.u32 2147483647, %v167
        %v424 = vand.u32 2147483647, %v168
        %v425 = vand.u32 2147483647, %v169
        %v426 = vand.u32 2147483647, %v170
        %v427 = vand.u32 2147483647, %v171
        %v428 = vand.u32 2147483647, %v172
        %v429 = vand.u32 2147483647, %v173
        %v430 = vand.u32 2147483647, %v174
        %v431 = vand.u32 2147483647, %v175
        %v432 = vand.u32 2147483647, %v176
        %v433 = vand.u32 2147483647, %v177
        %v434 = vand.u32 2147483647, %v178
        %v435 = vand.u32 2147483647, %v179
        %v436 = vand.u32 2147483647, %v180
        %v437 = vand.u32 2147483647, %v181
        %v438 = vand.u32 2147483647, %v182
        %v439 = vand.u32 2147483647, %v183
        %v440 = vand.u32 2147483647, %v184
        %v441 = vand.u32 2147483647, %v185
        %v442 = vand.u32 2147483647, %v186
        %v443 = vand.u32 2147483647, %v187
        %v444 = vand.u32 2147483647, %v188
        %v445 = vand.u32 2147483647, %v189
        %v446 = vand.u32 2147483647, %v190
        %v447 = vand.u32 2147483647, %v191
        %v448 = vand.u32 2147483647, %v192
        %v449 = vand.u32 2147483647, %v193
        %v450 = vand.u32 2147483647, %v194
        %v451 = vand.u32 2147483647, %v195
        %v452 = vand.u32 2147483647, %v196
        %v453 = vand.u32 2147483647, %v197
        %v454 = vand.u32 2147483647, %v198
        %v455 = vand.u32 2147483647, %v199
        %v456 = vand.u32 2147483647, %v200
        %v457 = vand.u32 2147483647, %v201
        %v458 = vand.u32 2147483647, %v202
        %v459 = vand.u32 2147483647, %v203
        %v460 = vand.u32 2147483647, %v204
        %v461 = vand.u32 2147483647, %v205
        %v462 = vand.u32 2147483647, %v206
        %v463 = vand.u32 2147483647, %v207
        %v464 = vand.u32 2147483647, %v208
        %v465 = vand.u32 2147483647, %v209
        %v466 = vand.u32 2147483647, %v210
        %v467 = vand.u32 2147483647, %v211
        %v468 = vand.u32 2147483647, %v212
        %v469 = vand.u32 2147483647, %v213
        %v470 = vand.u32 2147483647, %v214
        %v471 = vand.u32 2147483647, %v215
        %v472 = vand.u32 2147483647, %v216
        %v473 = vand.u32 2147483647, %v217
        %v474 = vand.u32 2147483647, %v218
        %v475 = vand.u32 2147483647, %v219
        %v476 = vand.u32 2147483647, %v220
        %v477 = vand.u32 2147483647, %v221
        %v478 = vand.u32 2147483647, %v222
        %v479 = vand.u32 2147483647, %v223
        %v480 = vand.u32 2147483647, %v224
        %v481 = vand.u32 2147483647, %v225
        %v482 = vand.u32 2147483647, %v226
        %v483 = vand.u32 2147483647, %v227
        %v484 = vand.u32 2147483647, %v228
        %v485 = vand.u32 2147483647, %v229
        %v486 = vand.u32 2147483647, %v230
        %v487 = vand.u32 2147483647, %v231
        %v488 = vand.u32 2147483647, %v232
        %v489 = vand.u32 2147483647, %v233
        %v490 = vand.u32 2147483647, %v234
        %v491 = vand.u32 2147483647, %v235
        %v492 = vand.u32 2147483647, %v236
        %v493 = vand.u32 2147483647, %v237
        %v494 = vand.u32 2147483647, %v238
        %v495 = vand.u32 2147483647, %v239
        %v496 = vand.u32 2147483647, %v240
        %v497 = vand.u32 2147483647, %v241
        %v498 = vand.u32 2147483647, %v242
        %v499 = vand.u32 2147483647, %v243
        %v500 = vand.u32 2147483647, %v244
        %v501 = vand.u32 2147483647, %v245
        %v502 = vand.u32 2147483647, %v246
        %v503 = vand.u32 2147483647, %v247
        %v504 = vand.u32 2147483647, %v248
        %v505 = vand.u32 2147483647, %v249
        %v506 = vand.u32 2147483647, %v250
        %v507 = vand.u32 2147483647, %v251
        %v508 = vand.u32 2147483647, %v252
        %v509 = vand.u32 2147483647, %v253
        %v510 = vand.u32 2147483647, %v254
        %v511 = vand.u32 2147483647, %v255
        %v512 = vand.u32 2147483647, %v256
        %v513 = vand.u32 2147483647, %v257
        %v514 = vand.u32 2147483647, %v258
        %v515 = vand.u32 2147483647, %v259
        %v516 = vand.u32 2147483647, %v260
        %v517 = vand.u32 2147483647, %v261
        %v518 = vand.u32 2147483647, %v262
        %v519 = vand.u32 2147483647, %v263
        %v520 = vand.u32 2147483647, %v264
        %v521 = vand.u32 2147483647, %v265
        %v522 = vsub.f32 0.0, %v394
        %v523 = vsub.f32 0.0, %v395
        %v524 = vsub.f32 0.0, %v396
        %v525 = vsub.f32 0.0, %v397
        %v526 = vsub.f32 0.0, %v398
        %v527 = vsub.f32 0.0, %v399
        %v528 = vsub.f32 0.0, %v400
        %v529 = vsub.f32 0.0, %v401
        %v530 = vsub.f32 0.0, %v402
        %v531 = vsub.f32 0.0, %v403
        %v532 = vsub.f32 0.0, %v404
        %v533 = vsub.f32 0.0, %v405
        %v534 = vsub.f32 0.0, %v406
        %v535 = vsub.f32 0.0, %v407
        %v536 = vsub.f32 0.0, %v408
        %v537 = vsub.f32 0.0, %v409
        %v538 = vsub.f32 0.0, %v410
        %v539 = vsub.f32 0.0, %v411
        %v540 = vsub.f32 0.0, %v412
        %v541 = vsub.f32 0.0, %v413
        %v542 = vsub.f32 0.0, %v414
        %v543 = vsub.f32 0.0, %v415
        %v544 = vsub.f32 0.0, %v416
        %v545 = vsub.f32 0.0, %v417
        %v546 = vsub.f32 0.0, %v418
        %v547 = vsub.f32 0.0, %v419
        %v548 = vsub.f32 0.0, %v420
        %v549 = vsub.f32 0.0, %v421
        %v550 = vsub.f32 0.0, %v422
        %v551 = vsub.f32 0.0, %v423
        %v552 = vsub.f32 0.0, %v424
        %v553 = vsub.f32 0.0, %v425
        %v554 = vsub.f32 0.0, %v426
        %v555 = vsub.f32 0.0, %v427
        %v556 = vsub.f32 0.0, %v428
        %v557 = vsub.f32 0.0, %v429
        %v558 = vsub.f32 0.0, %v430
        %v559 = vsub.f32 0.0, %v431
        %v560 = vsub.f32 0.0, %v432
        %v561 = vsub.f32 0.0, %v433
        %v562 = vsub.f32 0.0, %v434
        %v563 = vsub.f32 0.0, %v435
        %v564 = vsub.f32 0.0, %v436
        %v565 = vsub.f32 0.0, %v437
        %v566 = vsub.f32 0.0, %v438
        %v567 = vsub.f32 0.0, %v439
        %v568 = vsub.f32 0.0, %v440
        %v569 = vsub.f32 0.0, %v441
        %v570 = vsub.f32 0.0, %v442
        %v571 = vsub.f32 0.0, %v443
        %v572 = vsub.f32 0.0, %v444
        %v573 = vsub.f32 0.0, %v445
        %v574 = vsub.f32 0.0, %v446
        %v575 = vsub.f32 0.0, %v447
        %v576 = vsub.f32 0.0, %v448
        %v577 = vsub.f32 0.0, %v449
        %v578 = vsub.f32 0.0, %v450
        %v579 = vsub.f32 0.0, %v451
        %v580 = vsub.f32 0.0, %v452
        %v581 = vsub.f32 0.0, %v453
        %v582 = vsub.f32 0.0, %v454
        %v583 = vsub.f32 0.0, %v455
        %v584 = vsub.f32 0.0, %v456
        %v585 = vsub.f32 0.0, %v457
        %v586 = vsub.f32 0.0, %v458
        %v587 = vsub.f32 0.0, %v459
        %v588 = vsub.f32 0.0, %v460
        %v589 = vsub.f32 0.0, %v461
        %v590 = vsub.f32 0.0, %v462
        %v591 = vsub.f32 0.0, %v463
        %v592 = vsub.f32 0.0, %v464
        %v593 = vsub.f32 0.0, %v465
        %v594 = vsub.f32 0.0, %v466
        %v595 = vsub.f32 0.0, %v467
        %v596 = vsub.f32 0.0, %v468
        %v597 = vsub.f32 0.0, %v469
        %v598 = vsub.f32 0.0, %v470
        %v599 = vsub.f32 0.0, %v471
        %v600 = vsub.f32 0.0, %v472
        %v601 = vsub.f32 0.0, %v473
        %v602 = vsub.f32 0.0, %v474
        %v603 = vsub.f32 0.0, %v475
        %v604 = vsub.f32 0.0, %v476
        %v605 = vsub.f32 0.0, %v477
        %v606 = vsub.f32 0.0, %v478
        %v607 = vsub.f32 0.0, %v479
        %v608 = vsub.f32 0.0, %v480
        %v609 = vsub.f32 0.0, %v481
        %v610 = vsub.f32 0.0, %v482
        %v611 = vsub.f32 0.0, %v483
        %v612 = vsub.f32 0.0, %v484
        %v613 = vsub.f32 0.0, %v485
        %v614 = vsub.f32 0.0, %v486
        %v615 = vsub.f32 0.0, %v487
        %v616 = vsub.f32 0.0, %v488
        %v617 = vsub.f32 0.0, %v489
        %v618 = vsub.f32 0.0, %v490
        %v619 = vsub.f32 0.0, %v491
        %v620 = vsub.f32 0.0, %v492
        %v621 = vsub.f32 0.0, %v493
        %v622 = vsub.f32 0.0, %v494
        %v623 = vsub.f32 0.0, %v495
        %v624 = vsub.f32 0.0, %v496
        %v625 = vsub.f32 0.0, %v497
        %v626 = vsub.f32 0.0, %v498
        %v627 = vsub.f32 0.0, %v499
        %v628 = vsub.f32 0.0, %v500
        %v629 = vsub.f32 0.0, %v501
        %v630 = vsub.f32 0.0, %v502
        %v631 = vsub.f32 0.0, %v503
        %v632 = vsub.f32 0.0, %v504
        %v633 = vsub.f32 0.0, %v505
        %v634 = vsub.f32 0.0, %v506
        %v635 = vsub.f32 0.0, %v507
        %v636 = vsub.f32 0.0, %v508
        %v637 = vsub.f32 0.0, %v509
        %v638 = vsub.f32 0.0, %v510
        %v639 = vsub.f32 0.0, %v511
        %v640 = vsub.f32 0.0, %v512
        %v641 = vsub.f32 0.0, %v513
        %v642 = vsub.f32 0.0, %v514
        %v643 = vsub.f32 0.0, %v515
        %v644 = vsub.f32 0.0, %v516
        %v645 = vsub.f32 0.0, %v517
        %v646 = vsub.f32 0.0, %v518
        %v647 = vsub.f32 0.0, %v519
        %v648 = vsub.f32 0.0, %v520
        %v649 = vsub.f32 0.0, %v521
        %v650 = vmul.f32 %v522, 1.442695
        %v651 = vpow.pop %v650
        %v652 = vmul.f32 %v523, 1.442695
        %v653 = vpow.pop %v652
        %v654 = vmul.f32 %v524, 1.442695
        %v655 = vpow.pop %v654
        %v656 = vmul.f32 %v525, 1.442695
        %v657 = vpow.pop %v656
        %v658 = vmul.f32 %v526, 1.442695
        %v659 = vpow.pop %v658
        %v660 = vmul.f32 %v527, 1.442695
        %v661 = vpow.pop %v660
        %v662 = vmul.f32 %v528, 1.442695
        %v663 = vpow.pop %v662
        %v664 = vmul.f32 %v529, 1.442695
        %v665 = vpow.pop %v664
        %v666 = vmul.f32 %v530, 1.442695
        %v667 = vpow.pop %v666
        %v668 = vmul.f32 %v531, 1.442695
        %v669 = vpow.pop %v668
        %v670 = vmul.f32 %v532, 1.442695
        %v671 = vpow.pop %v670
        %v672 = vmul.f32 %v533, 1.442695
        %v673 = vpow.pop %v672
        %v674 = vmul.f32 %v534, 1.442695
        %v675 = vpow.pop %v674
        %v676 = vmul.f32 %v535, 1.442695
        %v677 = vpow.pop %v676
        %v678 = vmul.f32 %v536, 1.442695
        %v679 = vpow.pop %v678
        %v680 = vmul.f32 %v537, 1.442695
        %v681 = vpow.pop %v680
        %v682 = vmul.f32 %v538, 1.442695
        %v683 = vpow.pop %v682
        %v684 = vmul.f32 %v539, 1.442695
        %v685 = vpow.pop %v684
        %v686 = vmul.f32 %v540, 1.442695
        %v687 = vpow.pop %v686
        %v688 = vmul.f32 %v541, 1.442695
        %v689 = vpow.pop %v688
        %v690 = vmul.f32 %v542, 1.442695
        %v691 = vpow.pop %v690
        %v692 = vmul.f32 %v543, 1.442695
        %v693 = vpow.pop %v692
        %v694 = vmul.f32 %v544, 1.442695
        %v695 = vpow.pop %v694
        %v696 = vmul.f32 %v545, 1.442695
        %v697 = vpow.pop %v696
        %v698 = vmul.f32 %v546, 1.442695
        %v699 = vpow.pop %v698
        %v700 = vmul.f32 %v547, 1.442695
        %v701 = vpow.pop %v700
        %v702 = vmul.f32 %v548, 1.442695
        %v703 = vpow.pop %v702
        %v704 = vmul.f32 %v549, 1.442695
        %v705 = vpow.pop %v704
        %v706 = vmul.f32 %v550, 1.442695
        %v707 = vpow.pop %v706
        %v708 = vmul.f32 %v551, 1.442695
        %v709 = vpow.pop %v708
        %v710 = vmul.f32 %v552, 1.442695
        %v711 = vpow.pop %v710
        %v712 = vmul.f32 %v553, 1.442695
        %v713 = vpow.pop %v712
        %v714 = vmul.f32 %v554, 1.442695
        %v715 = vpow.pop %v714
        %v716 = vmul.f32 %v555, 1.442695
        %v717 = vpow.pop %v716
        %v718 = vmul.f32 %v556, 1.442695
        %v719 = vpow.pop %v718
        %v720 = vmul.f32 %v557, 1.442695
        %v721 = vpow.pop %v720
        %v722 = vmul.f32 %v558, 1.442695
        %v723 = vpow.pop %v722
        %v724 = vmul.f32 %v559, 1.442695
        %v725 = vpow.pop %v724
        %v726 = vmul.f32 %v560, 1.442695
        %v727 = vpow.pop %v726
        %v728 = vmul.f32 %v561, 1.442695
        %v729 = vpow.pop %v728
        %v730 = vmul.f32 %v562, 1.442695
        %v731 = vpow.pop %v730
        %v732 = vmul.f32 %v563, 1.442695
        %v733 = vpow.pop %v732
        %v734 = vmul.f32 %v564, 1.442695
        %v735 = vpow.pop %v734
        %v736 = vmul.f32 %v565, 1.442695
        %v737 = vpow.pop %v736
        %v738 = vmul.f32 %v566, 1.442695
        %v739 = vpow.pop %v738
        %v740 = vmul.f32 %v567, 1.442695
        %v741 = vpow.pop %v740
        %v742 = vmul.f32 %v568, 1.442695
        %v743 = vpow.pop %v742
        %v744 = vmul.f32 %v569, 1.442695
        %v745 = vpow.pop %v744
        %v746 = vmul.f32 %v570, 1.442695
        %v747 = vpow.pop %v746
        %v748 = vmul.f32 %v571, 1.442695
        %v749 = vpow.pop %v748
        %v750 = vmul.f32 %v572, 1.442695
        %v751 = vpow.pop %v750
        %v752 = vmul.f32 %v573, 1.442695
        %v753 = vpow.pop %v752
        %v754 = vmul.f32 %v574, 1.442695
        %v755 = vpow.pop %v754
        %v756 = vmul.f32 %v575, 1.442695
        %v757 = vpow.pop %v756
        %v758 = vmul.f32 %v576, 1.442695
        %v759 = vpow.pop %v758
        %v760 = vmul.f32 %v577, 1.442695
        %v761 = vpow.pop %v760
        %v762 = vmul.f32 %v578, 1.442695
        %v763 = vpow.pop %v762
        %v764 = vmul.f32 %v579, 1.442695
        %v765 = vpow.pop %v764
        %v766 = vmul.f32 %v580, 1.442695
        %v767 = vpow.pop %v766
        %v768 = vmul.f32 %v581, 1.442695
        %v769 = vpow.pop %v768
        %v770 = vmul.f32 %v582, 1.442695
        %v771 = vpow.pop %v770
        %v772 = vmul.f32 %v583, 1.442695
        %v773 = vpow.pop %v772
        %v774 = vmul.f32 %v584, 1.442695
        %v775 = vpow.pop %v774
        %v776 = vmul.f32 %v585, 1.442695
        %v777 = vpow.pop %v776
        %v778 = vmul.f32 %v586, 1.442695
        %v779 = vpow.pop %v778
        %v780 = vmul.f32 %v587, 1.442695
        %v781 = vpow.pop %v780
        %v782 = vmul.f32 %v588, 1.442695
        %v783 = vpow.pop %v782
        %v784 = vmul.f32 %v589, 1.442695
        %v785 = vpow.pop %v784
        %v786 = vmul.f32 %v590, 1.442695
        %v787 = vpow.pop %v786
        %v788 = vmul.f32 %v591, 1.442695
        %v789 = vpow.pop %v788
        %v790 = vmul.f32 %v592, 1.442695
        %v791 = vpow.pop %v790
        %v792 = vmul.f32 %v593, 1.442695
        %v793 = vpow.pop %v792
        %v794 = vmul.f32 %v594, 1.442695
        %v795 = vpow.pop %v794
        %v796 = vmul.f32 %v595, 1.442695
        %v797 = vpow.pop %v796
        %v798 = vmul.f32 %v596, 1.442695
        %v799 = vpow.pop %v798
        %v800 = vmul.f32 %v597, 1.442695
        %v801 = vpow.pop %v800
        %v802 = vmul.f32 %v598, 1.442695
        %v803 = vpow.pop %v802
        %v804 = vmul.f32 %v599, 1.442695
        %v805 = vpow.pop %v804
        %v806 = vmul.f32 %v600, 1.442695
        %v807 = vpow.pop %v806
        %v808 = vmul.f32 %v601, 1.442695
        %v809 = vpow.pop %v808
        %v810 = vmul.f32 %v602, 1.442695
        %v811 = vpow.pop %v810
        %v812 = vmul.f32 %v603, 1.442695
        %v813 = vpow.pop %v812
        %v814 = vmul.f32 %v604, 1.442695
        %v815 = vpow.pop %v814
        %v816 = vmul.f32 %v605, 1.442695
        %v817 = vpow.pop %v816
        %v818 = vmul.f32 %v606, 1.442695
        %v819 = vpow.pop %v818
        %v820 = vmul.f32 %v607, 1.442695
        %v821 = vpow.pop %v820
        %v822 = vmul.f32 %v608, 1.442695
        %v823 = vpow.pop %v822
        %v824 = vmul.f32 %v609, 1.442695
        %v825 = vpow.pop %v824
        %v826 = vmul.f32 %v610, 1.442695
        %v827 = vpow.pop %v826
        %v828 = vmul.f32 %v611, 1.442695
        %v829 = vpow.pop %v828
        %v830 = vmul.f32 %v612, 1.442695
        %v831 = vpow.pop %v830
        %v832 = vmul.f32 %v613, 1.442695
        %v833 = vpow.pop %v832
        %v834 = vmul.f32 %v614, 1.442695
        %v835 = vpow.pop %v834
        %v836 = vmul.f32 %v615, 1.442695
        %v837 = vpow.pop %v836
        %v838 = vmul.f32 %v616, 1.442695
        %v839 = vpow.pop %v838
        %v840 = vmul.f32 %v617, 1.442695
        %v841 = vpow.pop %v840
        %v842 = vmul.f32 %v618, 1.442695
        %v843 = vpow.pop %v842
        %v844 = vmul.f32 %v619, 1.442695
        %v845 = vpow.pop %v844
        %v846 = vmul.f32 %v620, 1.442695
        %v847 = vpow.pop %v846
        %v848 = vmul.f32 %v621, 1.442695
        %v849 = vpow.pop %v848
        %v850 = vmul.f32 %v622, 1.442695
        %v851 = vpow.pop %v850
        %v852 = vmul.f32 %v623, 1.442695
        %v853 = vpow.pop %v852
        %v854 = vmul.f32 %v624, 1.442695
        %v855 = vpow.pop %v854
        %v856 = vmul.f32 %v625, 1.442695
        %v857 = vpow.pop %v856
        %v858 = vmul.f32 %v626, 1.442695
        %v859 = vpow.pop %v858
        %v860 = vmul.f32 %v627, 1.442695
        %v861 = vpow.pop %v860
        %v862 = vmul.f32 %v628, 1.442695
        %v863 = vpow.pop %v862
        %v864 = vmul.f32 %v629, 1.442695
        %v865 = vpow.pop %v864
        %v866 = vmul.f32 %v630, 1.442695
        %v867 = vpow.pop %v866
        %v868 = vmul.f32 %v631, 1.442695
        %v869 = vpow.pop %v868
        %v870 = vmul.f32 %v632, 1.442695
        %v871 = vpow.pop %v870
        %v872 = vmul.f32 %v633, 1.442695
        %v873 = vpow.pop %v872
        %v874 = vmul.f32 %v634, 1.442695
        %v875 = vpow.pop %v874
        %v876 = vmul.f32 %v635, 1.442695
        %v877 = vpow.pop %v876
        %v878 = vmul.f32 %v636, 1.442695
        %v879 = vpow.pop %v878
        %v880 = vmul.f32 %v637, 1.442695
        %v881 = vpow.pop %v880
        %v882 = vmul.f32 %v638, 1.442695
        %v883 = vpow.pop %v882
        %v884 = vmul.f32 %v639, 1.442695
        %v885 = vpow.pop %v884
        %v886 = vmul.f32 %v640, 1.442695
        %v887 = vpow.pop %v886
        %v888 = vmul.f32 %v641, 1.442695
        %v889 = vpow.pop %v888
        %v890 = vmul.f32 %v642, 1.442695
        %v891 = vpow.pop %v890
        %v892 = vmul.f32 %v643, 1.442695
        %v893 = vpow.pop %v892
        %v894 = vmul.f32 %v644, 1.442695
        %v895 = vpow.pop %v894
        %v896 = vmul.f32 %v645, 1.442695
        %v897 = vpow.pop %v896
        %v898 = vmul.f32 %v646, 1.442695
        %v899 = vpow.pop %v898
        %v900 = vmul.f32 %v647, 1.442695
        %v901 = vpow.pop %v900
        %v902 = vmul.f32 %v648, 1.442695
        %v903 = vpow.pop %v902
        %v904 = vmul.f32 %v649, 1.442695
        %v905 = vpow.pop %v904
        %v906 = vadd.f32 %v651, 1.0
        %v907 = vlog2.pop %v906
        %v908 = vmul.f32 %v907, 0.6931472
        %v909 = vmul.f32 -0.5, %v651
        %v910 = vadd.f32 %v909, 1.0
        %v911 = vmul.f32 %v910, %v651
        %v912 = vand.u32 2147483647, %v651
        %vm913 = vcmp.lt.f32.partialorder %v912, 0.0004427343
        %v914 = vsel %vm913, %v911, %v908
        %v915 = vadd.f32 %v653, 1.0
        %v916 = vlog2.pop %v915
        %v917 = vmul.f32 %v916, 0.6931472
        %v918 = vmul.f32 -0.5, %v653
        %v919 = vadd.f32 %v918, 1.0
        %v920 = vmul.f32 %v919, %v653
        %v921 = vand.u32 2147483647, %v653
        %vm922 = vcmp.lt.f32.partialorder %v921, 0.0004427343
        %v923 = vsel %vm922, %v920, %v917
        %v924 = vadd.f32 %v655, 1.0
        %v925 = vlog2.pop %v924
        %v926 = vmul.f32 %v925, 0.6931472
        %v927 = vmul.f32 -0.5, %v655
        %v928 = vadd.f32 %v927, 1.0
        %v929 = vmul.f32 %v928, %v655
        %v930 = vand.u32 2147483647, %v655
        %vm931 = vcmp.lt.f32.partialorder %v930, 0.0004427343
        %v932 = vsel %vm931, %v929, %v926
        %v933 = vadd.f32 %v657, 1.0
        %v934 = vlog2.pop %v933
        %v935 = vmul.f32 %v934, 0.6931472
        %v936 = vmul.f32 -0.5, %v657
        %v937 = vadd.f32 %v936, 1.0
        %v938 = vmul.f32 %v937, %v657
        %v939 = vand.u32 2147483647, %v657
        %vm940 = vcmp.lt.f32.partialorder %v939, 0.0004427343
        %v941 = vsel %vm940, %v938, %v935
        %v942 = vadd.f32 %v659, 1.0
        %v943 = vlog2.pop %v942
        %v944 = vmul.f32 %v943, 0.6931472
        %v945 = vmul.f32 -0.5, %v659
        %v946 = vadd.f32 %v945, 1.0
        %v947 = vmul.f32 %v946, %v659
        %v948 = vand.u32 2147483647, %v659
        %vm949 = vcmp.lt.f32.partialorder %v948, 0.0004427343
        %v950 = vsel %vm949, %v947, %v944
        %v951 = vadd.f32 %v661, 1.0
        %v952 = vlog2.pop %v951
        %v953 = vmul.f32 %v952, 0.6931472
        %v954 = vmul.f32 -0.5, %v661
        %v955 = vadd.f32 %v954, 1.0
        %v956 = vmul.f32 %v955, %v661
        %v957 = vand.u32 2147483647, %v661
        %vm958 = vcmp.lt.f32.partialorder %v957, 0.0004427343
        %v959 = vsel %vm958, %v956, %v953
        %v960 = vadd.f32 %v663, 1.0
        %v961 = vlog2.pop %v960
        %v962 = vmul.f32 %v961, 0.6931472
        %v963 = vmul.f32 -0.5, %v663
        %v964 = vadd.f32 %v963, 1.0
        %v965 = vmul.f32 %v964, %v663
        %v966 = vand.u32 2147483647, %v663
        %vm967 = vcmp.lt.f32.partialorder %v966, 0.0004427343
        %v968 = vsel %vm967, %v965, %v962
        %v969 = vadd.f32 %v665, 1.0
        %v970 = vlog2.pop %v969
        %v971 = vmul.f32 %v970, 0.6931472
        %v972 = vmul.f32 -0.5, %v665
        %v973 = vadd.f32 %v972, 1.0
        %v974 = vmul.f32 %v973, %v665
        %v975 = vand.u32 2147483647, %v665
        %vm976 = vcmp.lt.f32.partialorder %v975, 0.0004427343
        %v977 = vsel %vm976, %v974, %v971
        %v978 = vadd.f32 %v667, 1.0
        %v979 = vlog2.pop %v978
        %v980 = vmul.f32 %v979, 0.6931472
        %v981 = vmul.f32 -0.5, %v667
        %v982 = vadd.f32 %v981, 1.0
        %v983 = vmul.f32 %v982, %v667
        %v984 = vand.u32 2147483647, %v667
        %vm985 = vcmp.lt.f32.partialorder %v984, 0.0004427343
        %v986 = vsel %vm985, %v983, %v980
        %v987 = vadd.f32 %v669, 1.0
        %v988 = vlog2.pop %v987
        %v989 = vmul.f32 %v988, 0.6931472
        %v990 = vmul.f32 -0.5, %v669
        %v991 = vadd.f32 %v990, 1.0
        %v992 = vmul.f32 %v991, %v669
        %v993 = vand.u32 2147483647, %v669
        %vm994 = vcmp.lt.f32.partialorder %v993, 0.0004427343
        %v995 = vsel %vm994, %v992, %v989
        %v996 = vadd.f32 %v671, 1.0
        %v997 = vlog2.pop %v996
        %v998 = vmul.f32 %v997, 0.6931472
        %v999 = vmul.f32 -0.5, %v671
        %v1000 = vadd.f32 %v999, 1.0
        %v1001 = vmul.f32 %v1000, %v671
        %v1002 = vand.u32 2147483647, %v671
        %vm1003 = vcmp.lt.f32.partialorder %v1002, 0.0004427343
        %v1004 = vsel %vm1003, %v1001, %v998
        %v1005 = vadd.f32 %v673, 1.0
        %v1006 = vlog2.pop %v1005
        %v1007 = vmul.f32 %v1006, 0.6931472
        %v1008 = vmul.f32 -0.5, %v673
        %v1009 = vadd.f32 %v1008, 1.0
        %v1010 = vmul.f32 %v1009, %v673
        %v1011 = vand.u32 2147483647, %v673
        %vm1012 = vcmp.lt.f32.partialorder %v1011, 0.0004427343
        %v1013 = vsel %vm1012, %v1010, %v1007
        %v1014 = vadd.f32 %v675, 1.0
        %v1015 = vlog2.pop %v1014
        %v1016 = vmul.f32 %v1015, 0.6931472
        %v1017 = vmul.f32 -0.5, %v675
        %v1018 = vadd.f32 %v1017, 1.0
        %v1019 = vmul.f32 %v1018, %v675
        %v1020 = vand.u32 2147483647, %v675
        %vm1021 = vcmp.lt.f32.partialorder %v1020, 0.0004427343
        %v1022 = vsel %vm1021, %v1019, %v1016
        %v1023 = vadd.f32 %v677, 1.0
        %v1024 = vlog2.pop %v1023
        %v1025 = vmul.f32 %v1024, 0.6931472
        %v1026 = vmul.f32 -0.5, %v677
        %v1027 = vadd.f32 %v1026, 1.0
        %v1028 = vmul.f32 %v1027, %v677
        %v1029 = vand.u32 2147483647, %v677
        %vm1030 = vcmp.lt.f32.partialorder %v1029, 0.0004427343
        %v1031 = vsel %vm1030, %v1028, %v1025
        %v1032 = vadd.f32 %v679, 1.0
        %v1033 = vlog2.pop %v1032
        %v1034 = vmul.f32 %v1033, 0.6931472
        %v1035 = vmul.f32 -0.5, %v679
        %v1036 = vadd.f32 %v1035, 1.0
        %v1037 = vmul.f32 %v1036, %v679
        %v1038 = vand.u32 2147483647, %v679
        %vm1039 = vcmp.lt.f32.partialorder %v1038, 0.0004427343
        %v1040 = vsel %vm1039, %v1037, %v1034
        %v1041 = vadd.f32 %v681, 1.0
        %v1042 = vlog2.pop %v1041
        %v1043 = vmul.f32 %v1042, 0.6931472
        %v1044 = vmul.f32 -0.5, %v681
        %v1045 = vadd.f32 %v1044, 1.0
        %v1046 = vmul.f32 %v1045, %v681
        %v1047 = vand.u32 2147483647, %v681
        %vm1048 = vcmp.lt.f32.partialorder %v1047, 0.0004427343
        %v1049 = vsel %vm1048, %v1046, %v1043
        %v1050 = vadd.f32 %v683, 1.0
        %v1051 = vlog2.pop %v1050
        %v1052 = vmul.f32 %v1051, 0.6931472
        %v1053 = vmul.f32 -0.5, %v683
        %v1054 = vadd.f32 %v1053, 1.0
        %v1055 = vmul.f32 %v1054, %v683
        %v1056 = vand.u32 2147483647, %v683
        %vm1057 = vcmp.lt.f32.partialorder %v1056, 0.0004427343
        %v1058 = vsel %vm1057, %v1055, %v1052
        %v1059 = vadd.f32 %v685, 1.0
        %v1060 = vlog2.pop %v1059
        %v1061 = vmul.f32 %v1060, 0.6931472
        %v1062 = vmul.f32 -0.5, %v685
        %v1063 = vadd.f32 %v1062, 1.0
        %v1064 = vmul.f32 %v1063, %v685
        %v1065 = vand.u32 2147483647, %v685
        %vm1066 = vcmp.lt.f32.partialorder %v1065, 0.0004427343
        %v1067 = vsel %vm1066, %v1064, %v1061
        %v1068 = vadd.f32 %v687, 1.0
        %v1069 = vlog2.pop %v1068
        %v1070 = vmul.f32 %v1069, 0.6931472
        %v1071 = vmul.f32 -0.5, %v687
        %v1072 = vadd.f32 %v1071, 1.0
        %v1073 = vmul.f32 %v1072, %v687
        %v1074 = vand.u32 2147483647, %v687
        %vm1075 = vcmp.lt.f32.partialorder %v1074, 0.0004427343
        %v1076 = vsel %vm1075, %v1073, %v1070
        %v1077 = vadd.f32 %v689, 1.0
        %v1078 = vlog2.pop %v1077
        %v1079 = vmul.f32 %v1078, 0.6931472
        %v1080 = vmul.f32 -0.5, %v689
        %v1081 = vadd.f32 %v1080, 1.0
        %v1082 = vmul.f32 %v1081, %v689
        %v1083 = vand.u32 2147483647, %v689
        %vm1084 = vcmp.lt.f32.partialorder %v1083, 0.0004427343
        %v1085 = vsel %vm1084, %v1082, %v1079
        %v1086 = vadd.f32 %v691, 1.0
        %v1087 = vlog2.pop %v1086
        %v1088 = vmul.f32 %v1087, 0.6931472
        %v1089 = vmul.f32 -0.5, %v691
        %v1090 = vadd.f32 %v1089, 1.0
        %v1091 = vmul.f32 %v1090, %v691
        %v1092 = vand.u32 2147483647, %v691
        %vm1093 = vcmp.lt.f32.partialorder %v1092, 0.0004427343
        %v1094 = vsel %vm1093, %v1091, %v1088
        %v1095 = vadd.f32 %v693, 1.0
        %v1096 = vlog2.pop %v1095
        %v1097 = vmul.f32 %v1096, 0.6931472
        %v1098 = vmul.f32 -0.5, %v693
        %v1099 = vadd.f32 %v1098, 1.0
        %v1100 = vmul.f32 %v1099, %v693
        %v1101 = vand.u32 2147483647, %v693
        %vm1102 = vcmp.lt.f32.partialorder %v1101, 0.0004427343
        %v1103 = vsel %vm1102, %v1100, %v1097
        %v1104 = vadd.f32 %v695, 1.0
        %v1105 = vlog2.pop %v1104
        %v1106 = vmul.f32 %v1105, 0.6931472
        %v1107 = vmul.f32 -0.5, %v695
        %v1108 = vadd.f32 %v1107, 1.0
        %v1109 = vmul.f32 %v1108, %v695
        %v1110 = vand.u32 2147483647, %v695
        %vm1111 = vcmp.lt.f32.partialorder %v1110, 0.0004427343
        %v1112 = vsel %vm1111, %v1109, %v1106
        %v1113 = vadd.f32 %v697, 1.0
        %v1114 = vlog2.pop %v1113
        %v1115 = vmul.f32 %v1114, 0.6931472
        %v1116 = vmul.f32 -0.5, %v697
        %v1117 = vadd.f32 %v1116, 1.0
        %v1118 = vmul.f32 %v1117, %v697
        %v1119 = vand.u32 2147483647, %v697
        %vm1120 = vcmp.lt.f32.partialorder %v1119, 0.0004427343
        %v1121 = vsel %vm1120, %v1118, %v1115
        %v1122 = vadd.f32 %v699, 1.0
        %v1123 = vlog2.pop %v1122
        %v1124 = vmul.f32 %v1123, 0.6931472
        %v1125 = vmul.f32 -0.5, %v699
        %v1126 = vadd.f32 %v1125, 1.0
        %v1127 = vmul.f32 %v1126, %v699
        %v1128 = vand.u32 2147483647, %v699
        %vm1129 = vcmp.lt.f32.partialorder %v1128, 0.0004427343
        %v1130 = vsel %vm1129, %v1127, %v1124
        %v1131 = vadd.f32 %v701, 1.0
        %v1132 = vlog2.pop %v1131
        %v1133 = vmul.f32 %v1132, 0.6931472
        %v1134 = vmul.f32 -0.5, %v701
        %v1135 = vadd.f32 %v1134, 1.0
        %v1136 = vmul.f32 %v1135, %v701
        %v1137 = vand.u32 2147483647, %v701
        %vm1138 = vcmp.lt.f32.partialorder %v1137, 0.0004427343
        %v1139 = vsel %vm1138, %v1136, %v1133
        %v1140 = vadd.f32 %v703, 1.0
        %v1141 = vlog2.pop %v1140
        %v1142 = vmul.f32 %v1141, 0.6931472
        %v1143 = vmul.f32 -0.5, %v703
        %v1144 = vadd.f32 %v1143, 1.0
        %v1145 = vmul.f32 %v1144, %v703
        %v1146 = vand.u32 2147483647, %v703
        %vm1147 = vcmp.lt.f32.partialorder %v1146, 0.0004427343
        %v1148 = vsel %vm1147, %v1145, %v1142
        %v1149 = vadd.f32 %v705, 1.0
        %v1150 = vlog2.pop %v1149
        %v1151 = vmul.f32 %v1150, 0.6931472
        %v1152 = vmul.f32 -0.5, %v705
        %v1153 = vadd.f32 %v1152, 1.0
        %v1154 = vmul.f32 %v1153, %v705
        %v1155 = vand.u32 2147483647, %v705
        %vm1156 = vcmp.lt.f32.partialorder %v1155, 0.0004427343
        %v1157 = vsel %vm1156, %v1154, %v1151
        %v1158 = vadd.f32 %v707, 1.0
        %v1159 = vlog2.pop %v1158
        %v1160 = vmul.f32 %v1159, 0.6931472
        %v1161 = vmul.f32 -0.5, %v707
        %v1162 = vadd.f32 %v1161, 1.0
        %v1163 = vmul.f32 %v1162, %v707
        %v1164 = vand.u32 2147483647, %v707
        %vm1165 = vcmp.lt.f32.partialorder %v1164, 0.0004427343
        %v1166 = vsel %vm1165, %v1163, %v1160
        %v1167 = vadd.f32 %v709, 1.0
        %v1168 = vlog2.pop %v1167
        %v1169 = vmul.f32 %v1168, 0.6931472
        %v1170 = vmul.f32 -0.5, %v709
        %v1171 = vadd.f32 %v1170, 1.0
        %v1172 = vmul.f32 %v1171, %v709
        %v1173 = vand.u32 2147483647, %v709
        %vm1174 = vcmp.lt.f32.partialorder %v1173, 0.0004427343
        %v1175 = vsel %vm1174, %v1172, %v1169
        %v1176 = vadd.f32 %v711, 1.0
        %v1177 = vlog2.pop %v1176
        %v1178 = vmul.f32 %v1177, 0.6931472
        %v1179 = vmul.f32 -0.5, %v711
        %v1180 = vadd.f32 %v1179, 1.0
        %v1181 = vmul.f32 %v1180, %v711
        %v1182 = vand.u32 2147483647, %v711
        %vm1183 = vcmp.lt.f32.partialorder %v1182, 0.0004427343
        %v1184 = vsel %vm1183, %v1181, %v1178
        %v1185 = vadd.f32 %v713, 1.0
        %v1186 = vlog2.pop %v1185
        %v1187 = vmul.f32 %v1186, 0.6931472
        %v1188 = vmul.f32 -0.5, %v713
        %v1189 = vadd.f32 %v1188, 1.0
        %v1190 = vmul.f32 %v1189, %v713
        %v1191 = vand.u32 2147483647, %v713
        %vm1192 = vcmp.lt.f32.partialorder %v1191, 0.0004427343
        %v1193 = vsel %vm1192, %v1190, %v1187
        %v1194 = vadd.f32 %v715, 1.0
        %v1195 = vlog2.pop %v1194
        %v1196 = vmul.f32 %v1195, 0.6931472
        %v1197 = vmul.f32 -0.5, %v715
        %v1198 = vadd.f32 %v1197, 1.0
        %v1199 = vmul.f32 %v1198, %v715
        %v1200 = vand.u32 2147483647, %v715
        %vm1201 = vcmp.lt.f32.partialorder %v1200, 0.0004427343
        %v1202 = vsel %vm1201, %v1199, %v1196
        %v1203 = vadd.f32 %v717, 1.0
        %v1204 = vlog2.pop %v1203
        %v1205 = vmul.f32 %v1204, 0.6931472
        %v1206 = vmul.f32 -0.5, %v717
        %v1207 = vadd.f32 %v1206, 1.0
        %v1208 = vmul.f32 %v1207, %v717
        %v1209 = vand.u32 2147483647, %v717
        %vm1210 = vcmp.lt.f32.partialorder %v1209, 0.0004427343
        %v1211 = vsel %vm1210, %v1208, %v1205
        %v1212 = vadd.f32 %v719, 1.0
        %v1213 = vlog2.pop %v1212
        %v1214 = vmul.f32 %v1213, 0.6931472
        %v1215 = vmul.f32 -0.5, %v719
        %v1216 = vadd.f32 %v1215, 1.0
        %v1217 = vmul.f32 %v1216, %v719
        %v1218 = vand.u32 2147483647, %v719
        %vm1219 = vcmp.lt.f32.partialorder %v1218, 0.0004427343
        %v1220 = vsel %vm1219, %v1217, %v1214
        %v1221 = vadd.f32 %v721, 1.0
        %v1222 = vlog2.pop %v1221
        %v1223 = vmul.f32 %v1222, 0.6931472
        %v1224 = vmul.f32 -0.5, %v721
        %v1225 = vadd.f32 %v1224, 1.0
        %v1226 = vmul.f32 %v1225, %v721
        %v1227 = vand.u32 2147483647, %v721
        %vm1228 = vcmp.lt.f32.partialorder %v1227, 0.0004427343
        %v1229 = vsel %vm1228, %v1226, %v1223
        %v1230 = vadd.f32 %v723, 1.0
        %v1231 = vlog2.pop %v1230
        %v1232 = vmul.f32 %v1231, 0.6931472
        %v1233 = vmul.f32 -0.5, %v723
        %v1234 = vadd.f32 %v1233, 1.0
        %v1235 = vmul.f32 %v1234, %v723
        %v1236 = vand.u32 2147483647, %v723
        %vm1237 = vcmp.lt.f32.partialorder %v1236, 0.0004427343
        %v1238 = vsel %vm1237, %v1235, %v1232
        %v1239 = vadd.f32 %v725, 1.0
        %v1240 = vlog2.pop %v1239
        %v1241 = vmul.f32 %v1240, 0.6931472
        %v1242 = vmul.f32 -0.5, %v725
        %v1243 = vadd.f32 %v1242, 1.0
        %v1244 = vmul.f32 %v1243, %v725
        %v1245 = vand.u32 2147483647, %v725
        %vm1246 = vcmp.lt.f32.partialorder %v1245, 0.0004427343
        %v1247 = vsel %vm1246, %v1244, %v1241
        %v1248 = vadd.f32 %v727, 1.0
        %v1249 = vlog2.pop %v1248
        %v1250 = vmul.f32 %v1249, 0.6931472
        %v1251 = vmul.f32 -0.5, %v727
        %v1252 = vadd.f32 %v1251, 1.0
        %v1253 = vmul.f32 %v1252, %v727
        %v1254 = vand.u32 2147483647, %v727
        %vm1255 = vcmp.lt.f32.partialorder %v1254, 0.0004427343
        %v1256 = vsel %vm1255, %v1253, %v1250
        %v1257 = vadd.f32 %v729, 1.0
        %v1258 = vlog2.pop %v1257
        %v1259 = vmul.f32 %v1258, 0.6931472
        %v1260 = vmul.f32 -0.5, %v729
        %v1261 = vadd.f32 %v1260, 1.0
        %v1262 = vmul.f32 %v1261, %v729
        %v1263 = vand.u32 2147483647, %v729
        %vm1264 = vcmp.lt.f32.partialorder %v1263, 0.0004427343
        %v1265 = vsel %vm1264, %v1262, %v1259
        %v1266 = vadd.f32 %v731, 1.0
        %v1267 = vlog2.pop %v1266
        %v1268 = vmul.f32 %v1267, 0.6931472
        %v1269 = vmul.f32 -0.5, %v731
        %v1270 = vadd.f32 %v1269, 1.0
        %v1271 = vmul.f32 %v1270, %v731
        %v1272 = vand.u32 2147483647, %v731
        %vm1273 = vcmp.lt.f32.partialorder %v1272, 0.0004427343
        %v1274 = vsel %vm1273, %v1271, %v1268
        %v1275 = vadd.f32 %v733, 1.0
        %v1276 = vlog2.pop %v1275
        %v1277 = vmul.f32 %v1276, 0.6931472
        %v1278 = vmul.f32 -0.5, %v733
        %v1279 = vadd.f32 %v1278, 1.0
        %v1280 = vmul.f32 %v1279, %v733
        %v1281 = vand.u32 2147483647, %v733
        %vm1282 = vcmp.lt.f32.partialorder %v1281, 0.0004427343
        %v1283 = vsel %vm1282, %v1280, %v1277
        %v1284 = vadd.f32 %v735, 1.0
        %v1285 = vlog2.pop %v1284
        %v1286 = vmul.f32 %v1285, 0.6931472
        %v1287 = vmul.f32 -0.5, %v735
        %v1288 = vadd.f32 %v1287, 1.0
        %v1289 = vmul.f32 %v1288, %v735
        %v1290 = vand.u32 2147483647, %v735
        %vm1291 = vcmp.lt.f32.partialorder %v1290, 0.0004427343
        %v1292 = vsel %vm1291, %v1289, %v1286
        %v1293 = vadd.f32 %v737, 1.0
        %v1294 = vlog2.pop %v1293
        %v1295 = vmul.f32 %v1294, 0.6931472
        %v1296 = vmul.f32 -0.5, %v737
        %v1297 = vadd.f32 %v1296, 1.0
        %v1298 = vmul.f32 %v1297, %v737
        %v1299 = vand.u32 2147483647, %v737
        %vm1300 = vcmp.lt.f32.partialorder %v1299, 0.0004427343
        %v1301 = vsel %vm1300, %v1298, %v1295
        %v1302 = vadd.f32 %v739, 1.0
        %v1303 = vlog2.pop %v1302
        %v1304 = vmul.f32 %v1303, 0.6931472
        %v1305 = vmul.f32 -0.5, %v739
        %v1306 = vadd.f32 %v1305, 1.0
        %v1307 = vmul.f32 %v1306, %v739
        %v1308 = vand.u32 2147483647, %v739
        %vm1309 = vcmp.lt.f32.partialorder %v1308, 0.0004427343
        %v1310 = vsel %vm1309, %v1307, %v1304
        %v1311 = vadd.f32 %v741, 1.0
        %v1312 = vlog2.pop %v1311
        %v1313 = vmul.f32 %v1312, 0.6931472
        %v1314 = vmul.f32 -0.5, %v741
        %v1315 = vadd.f32 %v1314, 1.0
        %v1316 = vmul.f32 %v1315, %v741
        %v1317 = vand.u32 2147483647, %v741
        %vm1318 = vcmp.lt.f32.partialorder %v1317, 0.0004427343
        %v1319 = vsel %vm1318, %v1316, %v1313
        %v1320 = vadd.f32 %v743, 1.0
        %v1321 = vlog2.pop %v1320
        %v1322 = vmul.f32 %v1321, 0.6931472
        %v1323 = vmul.f32 -0.5, %v743
        %v1324 = vadd.f32 %v1323, 1.0
        %v1325 = vmul.f32 %v1324, %v743
        %v1326 = vand.u32 2147483647, %v743
        %vm1327 = vcmp.lt.f32.partialorder %v1326, 0.0004427343
        %v1328 = vsel %vm1327, %v1325, %v1322
        %v1329 = vadd.f32 %v745, 1.0
        %v1330 = vlog2.pop %v1329
        %v1331 = vmul.f32 %v1330, 0.6931472
        %v1332 = vmul.f32 -0.5, %v745
        %v1333 = vadd.f32 %v1332, 1.0
        %v1334 = vmul.f32 %v1333, %v745
        %v1335 = vand.u32 2147483647, %v745
        %vm1336 = vcmp.lt.f32.partialorder %v1335, 0.0004427343
        %v1337 = vsel %vm1336, %v1334, %v1331
        %v1338 = vadd.f32 %v747, 1.0
        %v1339 = vlog2.pop %v1338
        %v1340 = vmul.f32 %v1339, 0.6931472
        %v1341 = vmul.f32 -0.5, %v747
        %v1342 = vadd.f32 %v1341, 1.0
        %v1343 = vmul.f32 %v1342, %v747
        %v1344 = vand.u32 2147483647, %v747
        %vm1345 = vcmp.lt.f32.partialorder %v1344, 0.0004427343
        %v1346 = vsel %vm1345, %v1343, %v1340
        %v1347 = vadd.f32 %v749, 1.0
        %v1348 = vlog2.pop %v1347
        %v1349 = vmul.f32 %v1348, 0.6931472
        %v1350 = vmul.f32 -0.5, %v749
        %v1351 = vadd.f32 %v1350, 1.0
        %v1352 = vmul.f32 %v1351, %v749
        %v1353 = vand.u32 2147483647, %v749
        %vm1354 = vcmp.lt.f32.partialorder %v1353, 0.0004427343
        %v1355 = vsel %vm1354, %v1352, %v1349
        %v1356 = vadd.f32 %v751, 1.0
        %v1357 = vlog2.pop %v1356
        %v1358 = vmul.f32 %v1357, 0.6931472
        %v1359 = vmul.f32 -0.5, %v751
        %v1360 = vadd.f32 %v1359, 1.0
        %v1361 = vmul.f32 %v1360, %v751
        %v1362 = vand.u32 2147483647, %v751
        %vm1363 = vcmp.lt.f32.partialorder %v1362, 0.0004427343
        %v1364 = vsel %vm1363, %v1361, %v1358
        %v1365 = vadd.f32 %v753, 1.0
        %v1366 = vlog2.pop %v1365
        %v1367 = vmul.f32 %v1366, 0.6931472
        %v1368 = vmul.f32 -0.5, %v753
        %v1369 = vadd.f32 %v1368, 1.0
        %v1370 = vmul.f32 %v1369, %v753
        %v1371 = vand.u32 2147483647, %v753
        %vm1372 = vcmp.lt.f32.partialorder %v1371, 0.0004427343
        %v1373 = vsel %vm1372, %v1370, %v1367
        %v1374 = vadd.f32 %v755, 1.0
        %v1375 = vlog2.pop %v1374
        %v1376 = vmul.f32 %v1375, 0.6931472
        %v1377 = vmul.f32 -0.5, %v755
        %v1378 = vadd.f32 %v1377, 1.0
        %v1379 = vmul.f32 %v1378, %v755
        %v1380 = vand.u32 2147483647, %v755
        %vm1381 = vcmp.lt.f32.partialorder %v1380, 0.0004427343
        %v1382 = vsel %vm1381, %v1379, %v1376
        %v1383 = vadd.f32 %v757, 1.0
        %v1384 = vlog2.pop %v1383
        %v1385 = vmul.f32 %v1384, 0.6931472
        %v1386 = vmul.f32 -0.5, %v757
        %v1387 = vadd.f32 %v1386, 1.0
        %v1388 = vmul.f32 %v1387, %v757
        %v1389 = vand.u32 2147483647, %v757
        %vm1390 = vcmp.lt.f32.partialorder %v1389, 0.0004427343
        %v1391 = vsel %vm1390, %v1388, %v1385
        %v1392 = vadd.f32 %v759, 1.0
        %v1393 = vlog2.pop %v1392
        %v1394 = vmul.f32 %v1393, 0.6931472
        %v1395 = vmul.f32 -0.5, %v759
        %v1396 = vadd.f32 %v1395, 1.0
        %v1397 = vmul.f32 %v1396, %v759
        %v1398 = vand.u32 2147483647, %v759
        %vm1399 = vcmp.lt.f32.partialorder %v1398, 0.0004427343
        %v1400 = vsel %vm1399, %v1397, %v1394
        %v1401 = vadd.f32 %v761, 1.0
        %v1402 = vlog2.pop %v1401
        %v1403 = vmul.f32 %v1402, 0.6931472
        %v1404 = vmul.f32 -0.5, %v761
        %v1405 = vadd.f32 %v1404, 1.0
        %v1406 = vmul.f32 %v1405, %v761
        %v1407 = vand.u32 2147483647, %v761
        %vm1408 = vcmp.lt.f32.partialorder %v1407, 0.0004427343
        %v1409 = vsel %vm1408, %v1406, %v1403
        %v1410 = vadd.f32 %v763, 1.0
        %v1411 = vlog2.pop %v1410
        %v1412 = vmul.f32 %v1411, 0.6931472
        %v1413 = vmul.f32 -0.5, %v763
        %v1414 = vadd.f32 %v1413, 1.0
        %v1415 = vmul.f32 %v1414, %v763
        %v1416 = vand.u32 2147483647, %v763
        %vm1417 = vcmp.lt.f32.partialorder %v1416, 0.0004427343
        %v1418 = vsel %vm1417, %v1415, %v1412
        %v1419 = vadd.f32 %v765, 1.0
        %v1420 = vlog2.pop %v1419
        %v1421 = vmul.f32 %v1420, 0.6931472
        %v1422 = vmul.f32 -0.5, %v765
        %v1423 = vadd.f32 %v1422, 1.0
        %v1424 = vmul.f32 %v1423, %v765
        %v1425 = vand.u32 2147483647, %v765
        %vm1426 = vcmp.lt.f32.partialorder %v1425, 0.0004427343
        %v1427 = vsel %vm1426, %v1424, %v1421
        %v1428 = vadd.f32 %v767, 1.0
        %v1429 = vlog2.pop %v1428
        %v1430 = vmul.f32 %v1429, 0.6931472
        %v1431 = vmul.f32 -0.5, %v767
        %v1432 = vadd.f32 %v1431, 1.0
        %v1433 = vmul.f32 %v1432, %v767
        %v1434 = vand.u32 2147483647, %v767
        %vm1435 = vcmp.lt.f32.partialorder %v1434, 0.0004427343
        %v1436 = vsel %vm1435, %v1433, %v1430
        %v1437 = vadd.f32 %v769, 1.0
        %v1438 = vlog2.pop %v1437
        %v1439 = vmul.f32 %v1438, 0.6931472
        %v1440 = vmul.f32 -0.5, %v769
        %v1441 = vadd.f32 %v1440, 1.0
        %v1442 = vmul.f32 %v1441, %v769
        %v1443 = vand.u32 2147483647, %v769
        %vm1444 = vcmp.lt.f32.partialorder %v1443, 0.0004427343
        %v1445 = vsel %vm1444, %v1442, %v1439
        %v1446 = vadd.f32 %v771, 1.0
        %v1447 = vlog2.pop %v1446
        %v1448 = vmul.f32 %v1447, 0.6931472
        %v1449 = vmul.f32 -0.5, %v771
        %v1450 = vadd.f32 %v1449, 1.0
        %v1451 = vmul.f32 %v1450, %v771
        %v1452 = vand.u32 2147483647, %v771
        %vm1453 = vcmp.lt.f32.partialorder %v1452, 0.0004427343
        %v1454 = vsel %vm1453, %v1451, %v1448
        %v1455 = vadd.f32 %v773, 1.0
        %v1456 = vlog2.pop %v1455
        %v1457 = vmul.f32 %v1456, 0.6931472
        %v1458 = vmul.f32 -0.5, %v773
        %v1459 = vadd.f32 %v1458, 1.0
        %v1460 = vmul.f32 %v1459, %v773
        %v1461 = vand.u32 2147483647, %v773
        %vm1462 = vcmp.lt.f32.partialorder %v1461, 0.0004427343
        %v1463 = vsel %vm1462, %v1460, %v1457
        %v1464 = vadd.f32 %v775, 1.0
        %v1465 = vlog2.pop %v1464
        %v1466 = vmul.f32 %v1465, 0.6931472
        %v1467 = vmul.f32 -0.5, %v775
        %v1468 = vadd.f32 %v1467, 1.0
        %v1469 = vmul.f32 %v1468, %v775
        %v1470 = vand.u32 2147483647, %v775
        %vm1471 = vcmp.lt.f32.partialorder %v1470, 0.0004427343
        %v1472 = vsel %vm1471, %v1469, %v1466
        %v1473 = vadd.f32 %v777, 1.0
        %v1474 = vlog2.pop %v1473
        %v1475 = vmul.f32 %v1474, 0.6931472
        %v1476 = vmul.f32 -0.5, %v777
        %v1477 = vadd.f32 %v1476, 1.0
        %v1478 = vmul.f32 %v1477, %v777
        %v1479 = vand.u32 2147483647, %v777
        %vm1480 = vcmp.lt.f32.partialorder %v1479, 0.0004427343
        %v1481 = vsel %vm1480, %v1478, %v1475
        %v1482 = vadd.f32 %v779, 1.0
        %v1483 = vlog2.pop %v1482
        %v1484 = vmul.f32 %v1483, 0.6931472
        %v1485 = vmul.f32 -0.5, %v779
        %v1486 = vadd.f32 %v1485, 1.0
        %v1487 = vmul.f32 %v1486, %v779
        %v1488 = vand.u32 2147483647, %v779
        %vm1489 = vcmp.lt.f32.partialorder %v1488, 0.0004427343
        %v1490 = vsel %vm1489, %v1487, %v1484
        %v1491 = vadd.f32 %v781, 1.0
        %v1492 = vlog2.pop %v1491
        %v1493 = vmul.f32 %v1492, 0.6931472
        %v1494 = vmul.f32 -0.5, %v781
        %v1495 = vadd.f32 %v1494, 1.0
        %v1496 = vmul.f32 %v1495, %v781
        %v1497 = vand.u32 2147483647, %v781
        %vm1498 = vcmp.lt.f32.partialorder %v1497, 0.0004427343
        %v1499 = vsel %vm1498, %v1496, %v1493
        %v1500 = vadd.f32 %v783, 1.0
        %v1501 = vlog2.pop %v1500
        %v1502 = vmul.f32 %v1501, 0.6931472
        %v1503 = vmul.f32 -0.5, %v783
        %v1504 = vadd.f32 %v1503, 1.0
        %v1505 = vmul.f32 %v1504, %v783
        %v1506 = vand.u32 2147483647, %v783
        %vm1507 = vcmp.lt.f32.partialorder %v1506, 0.0004427343
        %v1508 = vsel %vm1507, %v1505, %v1502
        %v1509 = vadd.f32 %v785, 1.0
        %v1510 = vlog2.pop %v1509
        %v1511 = vmul.f32 %v1510, 0.6931472
        %v1512 = vmul.f32 -0.5, %v785
        %v1513 = vadd.f32 %v1512, 1.0
        %v1514 = vmul.f32 %v1513, %v785
        %v1515 = vand.u32 2147483647, %v785
        %vm1516 = vcmp.lt.f32.partialorder %v1515, 0.0004427343
        %v1517 = vsel %vm1516, %v1514, %v1511
        %v1518 = vadd.f32 %v787, 1.0
        %v1519 = vlog2.pop %v1518
        %v1520 = vmul.f32 %v1519, 0.6931472
        %v1521 = vmul.f32 -0.5, %v787
        %v1522 = vadd.f32 %v1521, 1.0
        %v1523 = vmul.f32 %v1522, %v787
        %v1524 = vand.u32 2147483647, %v787
        %vm1525 = vcmp.lt.f32.partialorder %v1524, 0.0004427343
        %v1526 = vsel %vm1525, %v1523, %v1520
        %v1527 = vadd.f32 %v789, 1.0
        %v1528 = vlog2.pop %v1527
        %v1529 = vmul.f32 %v1528, 0.6931472
        %v1530 = vmul.f32 -0.5, %v789
        %v1531 = vadd.f32 %v1530, 1.0
        %v1532 = vmul.f32 %v1531, %v789
        %v1533 = vand.u32 2147483647, %v789
        %vm1534 = vcmp.lt.f32.partialorder %v1533, 0.0004427343
        %v1535 = vsel %vm1534, %v1532, %v1529
        %v1536 = vadd.f32 %v791, 1.0
        %v1537 = vlog2.pop %v1536
        %v1538 = vmul.f32 %v1537, 0.6931472
        %v1539 = vmul.f32 -0.5, %v791
        %v1540 = vadd.f32 %v1539, 1.0
        %v1541 = vmul.f32 %v1540, %v791
        %v1542 = vand.u32 2147483647, %v791
        %vm1543 = vcmp.lt.f32.partialorder %v1542, 0.0004427343
        %v1544 = vsel %vm1543, %v1541, %v1538
        %v1545 = vadd.f32 %v793, 1.0
        %v1546 = vlog2.pop %v1545
        %v1547 = vmul.f32 %v1546, 0.6931472
        %v1548 = vmul.f32 -0.5, %v793
        %v1549 = vadd.f32 %v1548, 1.0
        %v1550 = vmul.f32 %v1549, %v793
        %v1551 = vand.u32 2147483647, %v793
        %vm1552 = vcmp.lt.f32.partialorder %v1551, 0.0004427343
        %v1553 = vsel %vm1552, %v1550, %v1547
        %v1554 = vadd.f32 %v795, 1.0
        %v1555 = vlog2.pop %v1554
        %v1556 = vmul.f32 %v1555, 0.6931472
        %v1557 = vmul.f32 -0.5, %v795
        %v1558 = vadd.f32 %v1557, 1.0
        %v1559 = vmul.f32 %v1558, %v795
        %v1560 = vand.u32 2147483647, %v795
        %vm1561 = vcmp.lt.f32.partialorder %v1560, 0.0004427343
        %v1562 = vsel %vm1561, %v1559, %v1556
        %v1563 = vadd.f32 %v797, 1.0
        %v1564 = vlog2.pop %v1563
        %v1565 = vmul.f32 %v1564, 0.6931472
        %v1566 = vmul.f32 -0.5, %v797
        %v1567 = vadd.f32 %v1566, 1.0
        %v1568 = vmul.f32 %v1567, %v797
        %v1569 = vand.u32 2147483647, %v797
        %vm1570 = vcmp.lt.f32.partialorder %v1569, 0.0004427343
        %v1571 = vsel %vm1570, %v1568, %v1565
        %v1572 = vadd.f32 %v799, 1.0
        %v1573 = vlog2.pop %v1572
        %v1574 = vmul.f32 %v1573, 0.6931472
        %v1575 = vmul.f32 -0.5, %v799
        %v1576 = vadd.f32 %v1575, 1.0
        %v1577 = vmul.f32 %v1576, %v799
        %v1578 = vand.u32 2147483647, %v799
        %vm1579 = vcmp.lt.f32.partialorder %v1578, 0.0004427343
        %v1580 = vsel %vm1579, %v1577, %v1574
        %v1581 = vadd.f32 %v801, 1.0
        %v1582 = vlog2.pop %v1581
        %v1583 = vmul.f32 %v1582, 0.6931472
        %v1584 = vmul.f32 -0.5, %v801
        %v1585 = vadd.f32 %v1584, 1.0
        %v1586 = vmul.f32 %v1585, %v801
        %v1587 = vand.u32 2147483647, %v801
        %vm1588 = vcmp.lt.f32.partialorder %v1587, 0.0004427343
        %v1589 = vsel %vm1588, %v1586, %v1583
        %v1590 = vadd.f32 %v803, 1.0
        %v1591 = vlog2.pop %v1590
        %v1592 = vmul.f32 %v1591, 0.6931472
        %v1593 = vmul.f32 -0.5, %v803
        %v1594 = vadd.f32 %v1593, 1.0
        %v1595 = vmul.f32 %v1594, %v803
        %v1596 = vand.u32 2147483647, %v803
        %vm1597 = vcmp.lt.f32.partialorder %v1596, 0.0004427343
        %v1598 = vsel %vm1597, %v1595, %v1592
        %v1599 = vadd.f32 %v805, 1.0
        %v1600 = vlog2.pop %v1599
        %v1601 = vmul.f32 %v1600, 0.6931472
        %v1602 = vmul.f32 -0.5, %v805
        %v1603 = vadd.f32 %v1602, 1.0
        %v1604 = vmul.f32 %v1603, %v805
        %v1605 = vand.u32 2147483647, %v805
        %vm1606 = vcmp.lt.f32.partialorder %v1605, 0.0004427343
        %v1607 = vsel %vm1606, %v1604, %v1601
        %v1608 = vadd.f32 %v807, 1.0
        %v1609 = vlog2.pop %v1608
        %v1610 = vmul.f32 %v1609, 0.6931472
        %v1611 = vmul.f32 -0.5, %v807
        %v1612 = vadd.f32 %v1611, 1.0
        %v1613 = vmul.f32 %v1612, %v807
        %v1614 = vand.u32 2147483647, %v807
        %vm1615 = vcmp.lt.f32.partialorder %v1614, 0.0004427343
        %v1616 = vsel %vm1615, %v1613, %v1610
        %v1617 = vadd.f32 %v809, 1.0
        %v1618 = vlog2.pop %v1617
        %v1619 = vmul.f32 %v1618, 0.6931472
        %v1620 = vmul.f32 -0.5, %v809
        %v1621 = vadd.f32 %v1620, 1.0
        %v1622 = vmul.f32 %v1621, %v809
        %v1623 = vand.u32 2147483647, %v809
        %vm1624 = vcmp.lt.f32.partialorder %v1623, 0.0004427343
        %v1625 = vsel %vm1624, %v1622, %v1619
        %v1626 = vadd.f32 %v811, 1.0
        %v1627 = vlog2.pop %v1626
        %v1628 = vmul.f32 %v1627, 0.6931472
        %v1629 = vmul.f32 -0.5, %v811
        %v1630 = vadd.f32 %v1629, 1.0
        %v1631 = vmul.f32 %v1630, %v811
        %v1632 = vand.u32 2147483647, %v811
        %vm1633 = vcmp.lt.f32.partialorder %v1632, 0.0004427343
        %v1634 = vsel %vm1633, %v1631, %v1628
        %v1635 = vadd.f32 %v813, 1.0
        %v1636 = vlog2.pop %v1635
        %v1637 = vmul.f32 %v1636, 0.6931472
        %v1638 = vmul.f32 -0.5, %v813
        %v1639 = vadd.f32 %v1638, 1.0
        %v1640 = vmul.f32 %v1639, %v813
        %v1641 = vand.u32 2147483647, %v813
        %vm1642 = vcmp.lt.f32.partialorder %v1641, 0.0004427343
        %v1643 = vsel %vm1642, %v1640, %v1637
        %v1644 = vadd.f32 %v815, 1.0
        %v1645 = vlog2.pop %v1644
        %v1646 = vmul.f32 %v1645, 0.6931472
        %v1647 = vmul.f32 -0.5, %v815
        %v1648 = vadd.f32 %v1647, 1.0
        %v1649 = vmul.f32 %v1648, %v815
        %v1650 = vand.u32 2147483647, %v815
        %vm1651 = vcmp.lt.f32.partialorder %v1650, 0.0004427343
        %v1652 = vsel %vm1651, %v1649, %v1646
        %v1653 = vadd.f32 %v817, 1.0
        %v1654 = vlog2.pop %v1653
        %v1655 = vmul.f32 %v1654, 0.6931472
        %v1656 = vmul.f32 -0.5, %v817
        %v1657 = vadd.f32 %v1656, 1.0
        %v1658 = vmul.f32 %v1657, %v817
        %v1659 = vand.u32 2147483647, %v817
        %vm1660 = vcmp.lt.f32.partialorder %v1659, 0.0004427343
        %v1661 = vsel %vm1660, %v1658, %v1655
        %v1662 = vadd.f32 %v819, 1.0
        %v1663 = vlog2.pop %v1662
        %v1664 = vmul.f32 %v1663, 0.6931472
        %v1665 = vmul.f32 -0.5, %v819
        %v1666 = vadd.f32 %v1665, 1.0
        %v1667 = vmul.f32 %v1666, %v819
        %v1668 = vand.u32 2147483647, %v819
        %vm1669 = vcmp.lt.f32.partialorder %v1668, 0.0004427343
        %v1670 = vsel %vm1669, %v1667, %v1664
        %v1671 = vadd.f32 %v821, 1.0
        %v1672 = vlog2.pop %v1671
        %v1673 = vmul.f32 %v1672, 0.6931472
        %v1674 = vmul.f32 -0.5, %v821
        %v1675 = vadd.f32 %v1674, 1.0
        %v1676 = vmul.f32 %v1675, %v821
        %v1677 = vand.u32 2147483647, %v821
        %vm1678 = vcmp.lt.f32.partialorder %v1677, 0.0004427343
        %v1679 = vsel %vm1678, %v1676, %v1673
        %v1680 = vadd.f32 %v823, 1.0
        %v1681 = vlog2.pop %v1680
        %v1682 = vmul.f32 %v1681, 0.6931472
        %v1683 = vmul.f32 -0.5, %v823
        %v1684 = vadd.f32 %v1683, 1.0
        %v1685 = vmul.f32 %v1684, %v823
        %v1686 = vand.u32 2147483647, %v823
        %vm1687 = vcmp.lt.f32.partialorder %v1686, 0.0004427343
        %v1688 = vsel %vm1687, %v1685, %v1682
        %v1689 = vadd.f32 %v825, 1.0
        %v1690 = vlog2.pop %v1689
        %v1691 = vmul.f32 %v1690, 0.6931472
        %v1692 = vmul.f32 -0.5, %v825
        %v1693 = vadd.f32 %v1692, 1.0
        %v1694 = vmul.f32 %v1693, %v825
        %v1695 = vand.u32 2147483647, %v825
        %vm1696 = vcmp.lt.f32.partialorder %v1695, 0.0004427343
        %v1697 = vsel %vm1696, %v1694, %v1691
        %v1698 = vadd.f32 %v827, 1.0
        %v1699 = vlog2.pop %v1698
        %v1700 = vmul.f32 %v1699, 0.6931472
        %v1701 = vmul.f32 -0.5, %v827
        %v1702 = vadd.f32 %v1701, 1.0
        %v1703 = vmul.f32 %v1702, %v827
        %v1704 = vand.u32 2147483647, %v827
        %vm1705 = vcmp.lt.f32.partialorder %v1704, 0.0004427343
        %v1706 = vsel %vm1705, %v1703, %v1700
        %v1707 = vadd.f32 %v829, 1.0
        %v1708 = vlog2.pop %v1707
        %v1709 = vmul.f32 %v1708, 0.6931472
        %v1710 = vmul.f32 -0.5, %v829
        %v1711 = vadd.f32 %v1710, 1.0
        %v1712 = vmul.f32 %v1711, %v829
        %v1713 = vand.u32 2147483647, %v829
        %vm1714 = vcmp.lt.f32.partialorder %v1713, 0.0004427343
        %v1715 = vsel %vm1714, %v1712, %v1709
        %v1716 = vadd.f32 %v831, 1.0
        %v1717 = vlog2.pop %v1716
        %v1718 = vmul.f32 %v1717, 0.6931472
        %v1719 = vmul.f32 -0.5, %v831
        %v1720 = vadd.f32 %v1719, 1.0
        %v1721 = vmul.f32 %v1720, %v831
        %v1722 = vand.u32 2147483647, %v831
        %vm1723 = vcmp.lt.f32.partialorder %v1722, 0.0004427343
        %v1724 = vsel %vm1723, %v1721, %v1718
        %v1725 = vadd.f32 %v833, 1.0
        %v1726 = vlog2.pop %v1725
        %v1727 = vmul.f32 %v1726, 0.6931472
        %v1728 = vmul.f32 -0.5, %v833
        %v1729 = vadd.f32 %v1728, 1.0
        %v1730 = vmul.f32 %v1729, %v833
        %v1731 = vand.u32 2147483647, %v833
        %vm1732 = vcmp.lt.f32.partialorder %v1731, 0.0004427343
        %v1733 = vsel %vm1732, %v1730, %v1727
        %v1734 = vadd.f32 %v835, 1.0
        %v1735 = vlog2.pop %v1734
        %v1736 = vmul.f32 %v1735, 0.6931472
        %v1737 = vmul.f32 -0.5, %v835
        %v1738 = vadd.f32 %v1737, 1.0
        %v1739 = vmul.f32 %v1738, %v835
        %v1740 = vand.u32 2147483647, %v835
        %vm1741 = vcmp.lt.f32.partialorder %v1740, 0.0004427343
        %v1742 = vsel %vm1741, %v1739, %v1736
        %v1743 = vadd.f32 %v837, 1.0
        %v1744 = vlog2.pop %v1743
        %v1745 = vmul.f32 %v1744, 0.6931472
        %v1746 = vmul.f32 -0.5, %v837
        %v1747 = vadd.f32 %v1746, 1.0
        %v1748 = vmul.f32 %v1747, %v837
        %v1749 = vand.u32 2147483647, %v837
        %vm1750 = vcmp.lt.f32.partialorder %v1749, 0.0004427343
        %v1751 = vsel %vm1750, %v1748, %v1745
        %v1752 = vadd.f32 %v839, 1.0
        %v1753 = vlog2.pop %v1752
        %v1754 = vmul.f32 %v1753, 0.6931472
        %v1755 = vmul.f32 -0.5, %v839
        %v1756 = vadd.f32 %v1755, 1.0
        %v1757 = vmul.f32 %v1756, %v839
        %v1758 = vand.u32 2147483647, %v839
        %vm1759 = vcmp.lt.f32.partialorder %v1758, 0.0004427343
        %v1760 = vsel %vm1759, %v1757, %v1754
        %v1761 = vadd.f32 %v841, 1.0
        %v1762 = vlog2.pop %v1761
        %v1763 = vmul.f32 %v1762, 0.6931472
        %v1764 = vmul.f32 -0.5, %v841
        %v1765 = vadd.f32 %v1764, 1.0
        %v1766 = vmul.f32 %v1765, %v841
        %v1767 = vand.u32 2147483647, %v841
        %vm1768 = vcmp.lt.f32.partialorder %v1767, 0.0004427343
        %v1769 = vsel %vm1768, %v1766, %v1763
        %v1770 = vadd.f32 %v843, 1.0
        %v1771 = vlog2.pop %v1770
        %v1772 = vmul.f32 %v1771, 0.6931472
        %v1773 = vmul.f32 -0.5, %v843
        %v1774 = vadd.f32 %v1773, 1.0
        %v1775 = vmul.f32 %v1774, %v843
        %v1776 = vand.u32 2147483647, %v843
        %vm1777 = vcmp.lt.f32.partialorder %v1776, 0.0004427343
        %v1778 = vsel %vm1777, %v1775, %v1772
        %v1779 = vadd.f32 %v845, 1.0
        %v1780 = vlog2.pop %v1779
        %v1781 = vmul.f32 %v1780, 0.6931472
        %v1782 = vmul.f32 -0.5, %v845
        %v1783 = vadd.f32 %v1782, 1.0
        %v1784 = vmul.f32 %v1783, %v845
        %v1785 = vand.u32 2147483647, %v845
        %vm1786 = vcmp.lt.f32.partialorder %v1785, 0.0004427343
        %v1787 = vsel %vm1786, %v1784, %v1781
        %v1788 = vadd.f32 %v847, 1.0
        %v1789 = vlog2.pop %v1788
        %v1790 = vmul.f32 %v1789, 0.6931472
        %v1791 = vmul.f32 -0.5, %v847
        %v1792 = vadd.f32 %v1791, 1.0
        %v1793 = vmul.f32 %v1792, %v847
        %v1794 = vand.u32 2147483647, %v847
        %vm1795 = vcmp.lt.f32.partialorder %v1794, 0.0004427343
        %v1796 = vsel %vm1795, %v1793, %v1790
        %v1797 = vadd.f32 %v849, 1.0
        %v1798 = vlog2.pop %v1797
        %v1799 = vmul.f32 %v1798, 0.6931472
        %v1800 = vmul.f32 -0.5, %v849
        %v1801 = vadd.f32 %v1800, 1.0
        %v1802 = vmul.f32 %v1801, %v849
        %v1803 = vand.u32 2147483647, %v849
        %vm1804 = vcmp.lt.f32.partialorder %v1803, 0.0004427343
        %v1805 = vsel %vm1804, %v1802, %v1799
        %v1806 = vadd.f32 %v851, 1.0
        %v1807 = vlog2.pop %v1806
        %v1808 = vmul.f32 %v1807, 0.6931472
        %v1809 = vmul.f32 -0.5, %v851
        %v1810 = vadd.f32 %v1809, 1.0
        %v1811 = vmul.f32 %v1810, %v851
        %v1812 = vand.u32 2147483647, %v851
        %vm1813 = vcmp.lt.f32.partialorder %v1812, 0.0004427343
        %v1814 = vsel %vm1813, %v1811, %v1808
        %v1815 = vadd.f32 %v853, 1.0
        %v1816 = vlog2.pop %v1815
        %v1817 = vmul.f32 %v1816, 0.6931472
        %v1818 = vmul.f32 -0.5, %v853
        %v1819 = vadd.f32 %v1818, 1.0
        %v1820 = vmul.f32 %v1819, %v853
        %v1821 = vand.u32 2147483647, %v853
        %vm1822 = vcmp.lt.f32.partialorder %v1821, 0.0004427343
        %v1823 = vsel %vm1822, %v1820, %v1817
        %v1824 = vadd.f32 %v855, 1.0
        %v1825 = vlog2.pop %v1824
        %v1826 = vmul.f32 %v1825, 0.6931472
        %v1827 = vmul.f32 -0.5, %v855
        %v1828 = vadd.f32 %v1827, 1.0
        %v1829 = vmul.f32 %v1828, %v855
        %v1830 = vand.u32 2147483647, %v855
        %vm1831 = vcmp.lt.f32.partialorder %v1830, 0.0004427343
        %v1832 = vsel %vm1831, %v1829, %v1826
        %v1833 = vadd.f32 %v857, 1.0
        %v1834 = vlog2.pop %v1833
        %v1835 = vmul.f32 %v1834, 0.6931472
        %v1836 = vmul.f32 -0.5, %v857
        %v1837 = vadd.f32 %v1836, 1.0
        %v1838 = vmul.f32 %v1837, %v857
        %v1839 = vand.u32 2147483647, %v857
        %vm1840 = vcmp.lt.f32.partialorder %v1839, 0.0004427343
        %v1841 = vsel %vm1840, %v1838, %v1835
        %v1842 = vadd.f32 %v859, 1.0
        %v1843 = vlog2.pop %v1842
        %v1844 = vmul.f32 %v1843, 0.6931472
        %v1845 = vmul.f32 -0.5, %v859
        %v1846 = vadd.f32 %v1845, 1.0
        %v1847 = vmul.f32 %v1846, %v859
        %v1848 = vand.u32 2147483647, %v859
        %vm1849 = vcmp.lt.f32.partialorder %v1848, 0.0004427343
        %v1850 = vsel %vm1849, %v1847, %v1844
        %v1851 = vadd.f32 %v861, 1.0
        %v1852 = vlog2.pop %v1851
        %v1853 = vmul.f32 %v1852, 0.6931472
        %v1854 = vmul.f32 -0.5, %v861
        %v1855 = vadd.f32 %v1854, 1.0
        %v1856 = vmul.f32 %v1855, %v861
        %v1857 = vand.u32 2147483647, %v861
        %vm1858 = vcmp.lt.f32.partialorder %v1857, 0.0004427343
        %v1859 = vsel %vm1858, %v1856, %v1853
        %v1860 = vadd.f32 %v863, 1.0
        %v1861 = vlog2.pop %v1860
        %v1862 = vmul.f32 %v1861, 0.6931472
        %v1863 = vmul.f32 -0.5, %v863
        %v1864 = vadd.f32 %v1863, 1.0
        %v1865 = vmul.f32 %v1864, %v863
        %v1866 = vand.u32 2147483647, %v863
        %vm1867 = vcmp.lt.f32.partialorder %v1866, 0.0004427343
        %v1868 = vsel %vm1867, %v1865, %v1862
        %v1869 = vadd.f32 %v865, 1.0
        %v1870 = vlog2.pop %v1869
        %v1871 = vmul.f32 %v1870, 0.6931472
        %v1872 = vmul.f32 -0.5, %v865
        %v1873 = vadd.f32 %v1872, 1.0
        %v1874 = vmul.f32 %v1873, %v865
        %v1875 = vand.u32 2147483647, %v865
        %vm1876 = vcmp.lt.f32.partialorder %v1875, 0.0004427343
        %v1877 = vsel %vm1876, %v1874, %v1871
        %v1878 = vadd.f32 %v867, 1.0
        %v1879 = vlog2.pop %v1878
        %v1880 = vmul.f32 %v1879, 0.6931472
        %v1881 = vmul.f32 -0.5, %v867
        %v1882 = vadd.f32 %v1881, 1.0
        %v1883 = vmul.f32 %v1882, %v867
        %v1884 = vand.u32 2147483647, %v867
        %vm1885 = vcmp.lt.f32.partialorder %v1884, 0.0004427343
        %v1886 = vsel %vm1885, %v1883, %v1880
        %v1887 = vadd.f32 %v869, 1.0
        %v1888 = vlog2.pop %v1887
        %v1889 = vmul.f32 %v1888, 0.6931472
        %v1890 = vmul.f32 -0.5, %v869
        %v1891 = vadd.f32 %v1890, 1.0
        %v1892 = vmul.f32 %v1891, %v869
        %v1893 = vand.u32 2147483647, %v869
        %vm1894 = vcmp.lt.f32.partialorder %v1893, 0.0004427343
        %v1895 = vsel %vm1894, %v1892, %v1889
        %v1896 = vadd.f32 %v871, 1.0
        %v1897 = vlog2.pop %v1896
        %v1898 = vmul.f32 %v1897, 0.6931472
        %v1899 = vmul.f32 -0.5, %v871
        %v1900 = vadd.f32 %v1899, 1.0
        %v1901 = vmul.f32 %v1900, %v871
        %v1902 = vand.u32 2147483647, %v871
        %vm1903 = vcmp.lt.f32.partialorder %v1902, 0.0004427343
        %v1904 = vsel %vm1903, %v1901, %v1898
        %v1905 = vadd.f32 %v873, 1.0
        %v1906 = vlog2.pop %v1905
        %v1907 = vmul.f32 %v1906, 0.6931472
        %v1908 = vmul.f32 -0.5, %v873
        %v1909 = vadd.f32 %v1908, 1.0
        %v1910 = vmul.f32 %v1909, %v873
        %v1911 = vand.u32 2147483647, %v873
        %vm1912 = vcmp.lt.f32.partialorder %v1911, 0.0004427343
        %v1913 = vsel %vm1912, %v1910, %v1907
        %v1914 = vadd.f32 %v875, 1.0
        %v1915 = vlog2.pop %v1914
        %v1916 = vmul.f32 %v1915, 0.6931472
        %v1917 = vmul.f32 -0.5, %v875
        %v1918 = vadd.f32 %v1917, 1.0
        %v1919 = vmul.f32 %v1918, %v875
        %v1920 = vand.u32 2147483647, %v875
        %vm1921 = vcmp.lt.f32.partialorder %v1920, 0.0004427343
        %v1922 = vsel %vm1921, %v1919, %v1916
        %v1923 = vadd.f32 %v877, 1.0
        %v1924 = vlog2.pop %v1923
        %v1925 = vmul.f32 %v1924, 0.6931472
        %v1926 = vmul.f32 -0.5, %v877
        %v1927 = vadd.f32 %v1926, 1.0
        %v1928 = vmul.f32 %v1927, %v877
        %v1929 = vand.u32 2147483647, %v877
        %vm1930 = vcmp.lt.f32.partialorder %v1929, 0.0004427343
        %v1931 = vsel %vm1930, %v1928, %v1925
        %v1932 = vadd.f32 %v879, 1.0
        %v1933 = vlog2.pop %v1932
        %v1934 = vmul.f32 %v1933, 0.6931472
        %v1935 = vmul.f32 -0.5, %v879
        %v1936 = vadd.f32 %v1935, 1.0
        %v1937 = vmul.f32 %v1936, %v879
        %v1938 = vand.u32 2147483647, %v879
        %vm1939 = vcmp.lt.f32.partialorder %v1938, 0.0004427343
        %v1940 = vsel %vm1939, %v1937, %v1934
        %v1941 = vadd.f32 %v881, 1.0
        %v1942 = vlog2.pop %v1941
        %v1943 = vmul.f32 %v1942, 0.6931472
        %v1944 = vmul.f32 -0.5, %v881
        %v1945 = vadd.f32 %v1944, 1.0
        %v1946 = vmul.f32 %v1945, %v881
        %v1947 = vand.u32 2147483647, %v881
        %vm1948 = vcmp.lt.f32.partialorder %v1947, 0.0004427343
        %v1949 = vsel %vm1948, %v1946, %v1943
        %v1950 = vadd.f32 %v883, 1.0
        %v1951 = vlog2.pop %v1950
        %v1952 = vmul.f32 %v1951, 0.6931472
        %v1953 = vmul.f32 -0.5, %v883
        %v1954 = vadd.f32 %v1953, 1.0
        %v1955 = vmul.f32 %v1954, %v883
        %v1956 = vand.u32 2147483647, %v883
        %vm1957 = vcmp.lt.f32.partialorder %v1956, 0.0004427343
        %v1958 = vsel %vm1957, %v1955, %v1952
        %v1959 = vadd.f32 %v885, 1.0
        %v1960 = vlog2.pop %v1959
        %v1961 = vmul.f32 %v1960, 0.6931472
        %v1962 = vmul.f32 -0.5, %v885
        %v1963 = vadd.f32 %v1962, 1.0
        %v1964 = vmul.f32 %v1963, %v885
        %v1965 = vand.u32 2147483647, %v885
        %vm1966 = vcmp.lt.f32.partialorder %v1965, 0.0004427343
        %v1967 = vsel %vm1966, %v1964, %v1961
        %v1968 = vadd.f32 %v887, 1.0
        %v1969 = vlog2.pop %v1968
        %v1970 = vmul.f32 %v1969, 0.6931472
        %v1971 = vmul.f32 -0.5, %v887
        %v1972 = vadd.f32 %v1971, 1.0
        %v1973 = vmul.f32 %v1972, %v887
        %v1974 = vand.u32 2147483647, %v887
        %vm1975 = vcmp.lt.f32.partialorder %v1974, 0.0004427343
        %v1976 = vsel %vm1975, %v1973, %v1970
        %v1977 = vadd.f32 %v889, 1.0
        %v1978 = vlog2.pop %v1977
        %v1979 = vmul.f32 %v1978, 0.6931472
        %v1980 = vmul.f32 -0.5, %v889
        %v1981 = vadd.f32 %v1980, 1.0
        %v1982 = vmul.f32 %v1981, %v889
        %v1983 = vand.u32 2147483647, %v889
        %vm1984 = vcmp.lt.f32.partialorder %v1983, 0.0004427343
        %v1985 = vsel %vm1984, %v1982, %v1979
        %v1986 = vadd.f32 %v891, 1.0
        %v1987 = vlog2.pop %v1986
        %v1988 = vmul.f32 %v1987, 0.6931472
        %v1989 = vmul.f32 -0.5, %v891
        %v1990 = vadd.f32 %v1989, 1.0
        %v1991 = vmul.f32 %v1990, %v891
        %v1992 = vand.u32 2147483647, %v891
        %vm1993 = vcmp.lt.f32.partialorder %v1992, 0.0004427343
        %v1994 = vsel %vm1993, %v1991, %v1988
        %v1995 = vadd.f32 %v893, 1.0
        %v1996 = vlog2.pop %v1995
        %v1997 = vmul.f32 %v1996, 0.6931472
        %v1998 = vmul.f32 -0.5, %v893
        %v1999 = vadd.f32 %v1998, 1.0
        %v2000 = vmul.f32 %v1999, %v893
        %v2001 = vand.u32 2147483647, %v893
        %vm2002 = vcmp.lt.f32.partialorder %v2001, 0.0004427343
        %v2003 = vsel %vm2002, %v2000, %v1997
        %v2004 = vadd.f32 %v895, 1.0
        %v2005 = vlog2.pop %v2004
        %v2006 = vmul.f32 %v2005, 0.6931472
        %v2007 = vmul.f32 -0.5, %v895
        %v2008 = vadd.f32 %v2007, 1.0
        %v2009 = vmul.f32 %v2008, %v895
        %v2010 = vand.u32 2147483647, %v895
        %vm2011 = vcmp.lt.f32.partialorder %v2010, 0.0004427343
        %v2012 = vsel %vm2011, %v2009, %v2006
        %v2013 = vadd.f32 %v897, 1.0
        %v2014 = vlog2.pop %v2013
        %v2015 = vmul.f32 %v2014, 0.6931472
        %v2016 = vmul.f32 -0.5, %v897
        %v2017 = vadd.f32 %v2016, 1.0
        %v2018 = vmul.f32 %v2017, %v897
        %v2019 = vand.u32 2147483647, %v897
        %vm2020 = vcmp.lt.f32.partialorder %v2019, 0.0004427343
        %v2021 = vsel %vm2020, %v2018, %v2015
        %v2022 = vadd.f32 %v899, 1.0
        %v2023 = vlog2.pop %v2022
        %v2024 = vmul.f32 %v2023, 0.6931472
        %v2025 = vmul.f32 -0.5, %v899
        %v2026 = vadd.f32 %v2025, 1.0
        %v2027 = vmul.f32 %v2026, %v899
        %v2028 = vand.u32 2147483647, %v899
        %vm2029 = vcmp.lt.f32.partialorder %v2028, 0.0004427343
        %v2030 = vsel %vm2029, %v2027, %v2024
        %v2031 = vadd.f32 %v901, 1.0
        %v2032 = vlog2.pop %v2031
        %v2033 = vmul.f32 %v2032, 0.6931472
        %v2034 = vmul.f32 -0.5, %v901
        %v2035 = vadd.f32 %v2034, 1.0
        %v2036 = vmul.f32 %v2035, %v901
        %v2037 = vand.u32 2147483647, %v901
        %vm2038 = vcmp.lt.f32.partialorder %v2037, 0.0004427343
        %v2039 = vsel %vm2038, %v2036, %v2033
        %v2040 = vadd.f32 %v903, 1.0
        %v2041 = vlog2.pop %v2040
        %v2042 = vmul.f32 %v2041, 0.6931472
        %v2043 = vmul.f32 -0.5, %v903
        %v2044 = vadd.f32 %v2043, 1.0
        %v2045 = vmul.f32 %v2044, %v903
        %v2046 = vand.u32 2147483647, %v903
        %vm2047 = vcmp.lt.f32.partialorder %v2046, 0.0004427343
        %v2048 = vsel %vm2047, %v2045, %v2042
        %v2049 = vadd.f32 %v905, 1.0
        %v2050 = vlog2.pop %v2049
        %v2051 = vmul.f32 %v2050, 0.6931472
        %v2052 = vmul.f32 -0.5, %v905
        %v2053 = vadd.f32 %v2052, 1.0
        %v2054 = vmul.f32 %v2053, %v905
        %v2055 = vand.u32 2147483647, %v905
        %vm2056 = vcmp.lt.f32.partialorder %v2055, 0.0004427343
        %v2057 = vsel %vm2056, %v2054, %v2051
        %v2058 = vadd.f32 %v266, %v914
        %v2059 = vadd.f32 %v267, %v923
        %v2060 = vadd.f32 %v268, %v932
        %v2061 = vadd.f32 %v269, %v941
        %v2062 = vadd.f32 %v270, %v950
        %v2063 = vadd.f32 %v271, %v959
        %v2064 = vadd.f32 %v272, %v968
        %v2065 = vadd.f32 %v273, %v977
        %v2066 = vadd.f32 %v274, %v986
        %v2067 = vadd.f32 %v275, %v995
        %v2068 = vadd.f32 %v276, %v1004
        %v2069 = vadd.f32 %v277, %v1013
        %v2070 = vadd.f32 %v278, %v1022
        %v2071 = vadd.f32 %v279, %v1031
        %v2072 = vadd.f32 %v280, %v1040
        %v2073 = vadd.f32 %v281, %v1049
        %v2074 = vadd.f32 %v282, %v1058
        %v2075 = vadd.f32 %v283, %v1067
        %v2076 = vadd.f32 %v284, %v1076
        %v2077 = vadd.f32 %v285, %v1085
        %v2078 = vadd.f32 %v286, %v1094
        %v2079 = vadd.f32 %v287, %v1103
        %v2080 = vadd.f32 %v288, %v1112
        %v2081 = vadd.f32 %v289, %v1121
        %v2082 = vadd.f32 %v290, %v1130
        %v2083 = vadd.f32 %v291, %v1139
        %v2084 = vadd.f32 %v292, %v1148
        %v2085 = vadd.f32 %v293, %v1157
        %v2086 = vadd.f32 %v294, %v1166
        %v2087 = vadd.f32 %v295, %v1175
        %v2088 = vadd.f32 %v296, %v1184
        %v2089 = vadd.f32 %v297, %v1193
        %v2090 = vadd.f32 %v298, %v1202
        %v2091 = vadd.f32 %v299, %v1211
        %v2092 = vadd.f32 %v300, %v1220
        %v2093 = vadd.f32 %v301, %v1229
        %v2094 = vadd.f32 %v302, %v1238
        %v2095 = vadd.f32 %v303, %v1247
        %v2096 = vadd.f32 %v304, %v1256
        %v2097 = vadd.f32 %v305, %v1265
        %v2098 = vadd.f32 %v306, %v1274
        %v2099 = vadd.f32 %v307, %v1283
        %v2100 = vadd.f32 %v308, %v1292
        %v2101 = vadd.f32 %v309, %v1301
        %v2102 = vadd.f32 %v310, %v1310
        %v2103 = vadd.f32 %v311, %v1319
        %v2104 = vadd.f32 %v312, %v1328
        %v2105 = vadd.f32 %v313, %v1337
        %v2106 = vadd.f32 %v314, %v1346
        %v2107 = vadd.f32 %v315, %v1355
        %v2108 = vadd.f32 %v316, %v1364
        %v2109 = vadd.f32 %v317, %v1373
        %v2110 = vadd.f32 %v318, %v1382
        %v2111 = vadd.f32 %v319, %v1391
        %v2112 = vadd.f32 %v320, %v1400
        %v2113 = vadd.f32 %v321, %v1409
        %v2114 = vadd.f32 %v322, %v1418
        %v2115 = vadd.f32 %v323, %v1427
        %v2116 = vadd.f32 %v324, %v1436
        %v2117 = vadd.f32 %v325, %v1445
        %v2118 = vadd.f32 %v326, %v1454
        %v2119 = vadd.f32 %v327, %v1463
        %v2120 = vadd.f32 %v328, %v1472
        %v2121 = vadd.f32 %v329, %v1481
        %v2122 = vadd.f32 %v330, %v1490
        %v2123 = vadd.f32 %v331, %v1499
        %v2124 = vadd.f32 %v332, %v1508
        %v2125 = vadd.f32 %v333, %v1517
        %v2126 = vadd.f32 %v334, %v1526
        %v2127 = vadd.f32 %v335, %v1535
        %v2128 = vadd.f32 %v336, %v1544
        %v2129 = vadd.f32 %v337, %v1553
        %v2130 = vadd.f32 %v338, %v1562
        %v2131 = vadd.f32 %v339, %v1571
        %v2132 = vadd.f32 %v340, %v1580
        %v2133 = vadd.f32 %v341, %v1589
        %v2134 = vadd.f32 %v342, %v1598
        %v2135 = vadd.f32 %v343, %v1607
        %v2136 = vadd.f32 %v344, %v1616
        %v2137 = vadd.f32 %v345, %v1625
        %v2138 = vadd.f32 %v346, %v1634
        %v2139 = vadd.f32 %v347, %v1643
        %v2140 = vadd.f32 %v348, %v1652
        %v2141 = vadd.f32 %v349, %v1661
        %v2142 = vadd.f32 %v350, %v1670
        %v2143 = vadd.f32 %v351, %v1679
        %v2144 = vadd.f32 %v352, %v1688
        %v2145 = vadd.f32 %v353, %v1697
        %v2146 = vadd.f32 %v354, %v1706
        %v2147 = vadd.f32 %v355, %v1715
        %v2148 = vadd.f32 %v356, %v1724
        %v2149 = vadd.f32 %v357, %v1733
        %v2150 = vadd.f32 %v358, %v1742
        %v2151 = vadd.f32 %v359, %v1751
        %v2152 = vadd.f32 %v360, %v1760
        %v2153 = vadd.f32 %v361, %v1769
        %v2154 = vadd.f32 %v362, %v1778
        %v2155 = vadd.f32 %v363, %v1787
        %v2156 = vadd.f32 %v364, %v1796
        %v2157 = vadd.f32 %v365, %v1805
        %v2158 = vadd.f32 %v366, %v1814
        %v2159 = vadd.f32 %v367, %v1823
        %v2160 = vadd.f32 %v368, %v1832
        %v2161 = vadd.f32 %v369, %v1841
        %v2162 = vadd.f32 %v370, %v1850
        %v2163 = vadd.f32 %v371, %v1859
        %v2164 = vadd.f32 %v372, %v1868
        %v2165 = vadd.f32 %v373, %v1877
        %v2166 = vadd.f32 %v374, %v1886
        %v2167 = vadd.f32 %v375, %v1895
        %v2168 = vadd.f32 %v376, %v1904
        %v2169 = vadd.f32 %v377, %v1913
        %v2170 = vadd.f32 %v378, %v1922
        %v2171 = vadd.f32 %v379, %v1931
        %v2172 = vadd.f32 %v380, %v1940
        %v2173 = vadd.f32 %v381, %v1949
        %v2174 = vadd.f32 %v382, %v1958
        %v2175 = vadd.f32 %v383, %v1967
        %v2176 = vadd.f32 %v384, %v1976
        %v2177 = vadd.f32 %v385, %v1985
        %v2178 = vadd.f32 %v386, %v1994
        %v2179 = vadd.f32 %v387, %v2003
        %v2180 = vadd.f32 %v388, %v2012
        %v2181 = vadd.f32 %v389, %v2021
        %v2182 = vadd.f32 %v390, %v2030
        %v2183 = vadd.f32 %v391, %v2039
        %v2184 = vadd.f32 %v392, %v2048
        %v2185 = vadd.f32 %v393, %v2057
        %v2186 = vsub.f32 %v2058, 0.6931472
        %v2187 = vsub.f32 %v2059, 0.6931472
        %v2188 = vsub.f32 %v2060, 0.6931472
        %v2189 = vsub.f32 %v2061, 0.6931472
        %v2190 = vsub.f32 %v2062, 0.6931472
        %v2191 = vsub.f32 %v2063, 0.6931472
        %v2192 = vsub.f32 %v2064, 0.6931472
        %v2193 = vsub.f32 %v2065, 0.6931472
        %v2194 = vsub.f32 %v2066, 0.6931472
        %v2195 = vsub.f32 %v2067, 0.6931472
        %v2196 = vsub.f32 %v2068, 0.6931472
        %v2197 = vsub.f32 %v2069, 0.6931472
        %v2198 = vsub.f32 %v2070, 0.6931472
        %v2199 = vsub.f32 %v2071, 0.6931472
        %v2200 = vsub.f32 %v2072, 0.6931472
        %v2201 = vsub.f32 %v2073, 0.6931472
        %v2202 = vsub.f32 %v2074, 0.6931472
        %v2203 = vsub.f32 %v2075, 0.6931472
        %v2204 = vsub.f32 %v2076, 0.6931472
        %v2205 = vsub.f32 %v2077, 0.6931472
        %v2206 = vsub.f32 %v2078, 0.6931472
        %v2207 = vsub.f32 %v2079, 0.6931472
        %v2208 = vsub.f32 %v2080, 0.6931472
        %v2209 = vsub.f32 %v2081, 0.6931472
        %v2210 = vsub.f32 %v2082, 0.6931472
        %v2211 = vsub.f32 %v2083, 0.6931472
        %v2212 = vsub.f32 %v2084, 0.6931472
        %v2213 = vsub.f32 %v2085, 0.6931472
        %v2214 = vsub.f32 %v2086, 0.6931472
        %v2215 = vsub.f32 %v2087, 0.6931472
        %v2216 = vsub.f32 %v2088, 0.6931472
        %v2217 = vsub.f32 %v2089, 0.6931472
        %v2218 = vsub.f32 %v2090, 0.6931472
        %v2219 = vsub.f32 %v2091, 0.6931472
        %v2220 = vsub.f32 %v2092, 0.6931472
        %v2221 = vsub.f32 %v2093, 0.6931472
        %v2222 = vsub.f32 %v2094, 0.6931472
        %v2223 = vsub.f32 %v2095, 0.6931472
        %v2224 = vsub.f32 %v2096, 0.6931472
        %v2225 = vsub.f32 %v2097, 0.6931472
        %v2226 = vsub.f32 %v2098, 0.6931472
        %v2227 = vsub.f32 %v2099, 0.6931472
        %v2228 = vsub.f32 %v2100, 0.6931472
        %v2229 = vsub.f32 %v2101, 0.6931472
        %v2230 = vsub.f32 %v2102, 0.6931472
        %v2231 = vsub.f32 %v2103, 0.6931472
        %v2232 = vsub.f32 %v2104, 0.6931472
        %v2233 = vsub.f32 %v2105, 0.6931472
        %v2234 = vsub.f32 %v2106, 0.6931472
        %v2235 = vsub.f32 %v2107, 0.6931472
        %v2236 = vsub.f32 %v2108, 0.6931472
        %v2237 = vsub.f32 %v2109, 0.6931472
        %v2238 = vsub.f32 %v2110, 0.6931472
        %v2239 = vsub.f32 %v2111, 0.6931472
        %v2240 = vsub.f32 %v2112, 0.6931472
        %v2241 = vsub.f32 %v2113, 0.6931472
        %v2242 = vsub.f32 %v2114, 0.6931472
        %v2243 = vsub.f32 %v2115, 0.6931472
        %v2244 = vsub.f32 %v2116, 0.6931472
        %v2245 = vsub.f32 %v2117, 0.6931472
        %v2246 = vsub.f32 %v2118, 0.6931472
        %v2247 = vsub.f32 %v2119, 0.6931472
        %v2248 = vsub.f32 %v2120, 0.6931472
        %v2249 = vsub.f32 %v2121, 0.6931472
        %v2250 = vsub.f32 %v2122, 0.6931472
        %v2251 = vsub.f32 %v2123, 0.6931472
        %v2252 = vsub.f32 %v2124, 0.6931472
        %v2253 = vsub.f32 %v2125, 0.6931472
        %v2254 = vsub.f32 %v2126, 0.6931472
        %v2255 = vsub.f32 %v2127, 0.6931472
        %v2256 = vsub.f32 %v2128, 0.6931472
        %v2257 = vsub.f32 %v2129, 0.6931472
        %v2258 = vsub.f32 %v2130, 0.6931472
        %v2259 = vsub.f32 %v2131, 0.6931472
        %v2260 = vsub.f32 %v2132, 0.6931472
        %v2261 = vsub.f32 %v2133, 0.6931472
        %v2262 = vsub.f32 %v2134, 0.6931472
        %v2263 = vsub.f32 %v2135, 0.6931472
        %v2264 = vsub.f32 %v2136, 0.6931472
        %v2265 = vsub.f32 %v2137, 0.6931472
        %v2266 = vsub.f32 %v2138, 0.6931472
        %v2267 = vsub.f32 %v2139, 0.6931472
        %v2268 = vsub.f32 %v2140, 0.6931472
        %v2269 = vsub.f32 %v2141, 0.6931472
        %v2270 = vsub.f32 %v2142, 0.6931472
        %v2271 = vsub.f32 %v2143, 0.6931472
        %v2272 = vsub.f32 %v2144, 0.6931472
        %v2273 = vsub.f32 %v2145, 0.6931472
        %v2274 = vsub.f32 %v2146, 0.6931472
        %v2275 = vsub.f32 %v2147, 0.6931472
        %v2276 = vsub.f32 %v2148, 0.6931472
        %v2277 = vsub.f32 %v2149, 0.6931472
        %v2278 = vsub.f32 %v2150, 0.6931472
        %v2279 = vsub.f32 %v2151, 0.6931472
        %v2280 = vsub.f32 %v2152, 0.6931472
        %v2281 = vsub.f32 %v2153, 0.6931472
        %v2282 = vsub.f32 %v2154, 0.6931472
        %v2283 = vsub.f32 %v2155, 0.6931472
        %v2284 = vsub.f32 %v2156, 0.6931472
        %v2285 = vsub.f32 %v2157, 0.6931472
        %v2286 = vsub.f32 %v2158, 0.6931472
        %v2287 = vsub.f32 %v2159, 0.6931472
        %v2288 = vsub.f32 %v2160, 0.6931472
        %v2289 = vsub.f32 %v2161, 0.6931472
        %v2290 = vsub.f32 %v2162, 0.6931472
        %v2291 = vsub.f32 %v2163, 0.6931472
        %v2292 = vsub.f32 %v2164, 0.6931472
        %v2293 = vsub.f32 %v2165, 0.6931472
        %v2294 = vsub.f32 %v2166, 0.6931472
        %v2295 = vsub.f32 %v2167, 0.6931472
        %v2296 = vsub.f32 %v2168, 0.6931472
        %v2297 = vsub.f32 %v2169, 0.6931472
        %v2298 = vsub.f32 %v2170, 0.6931472
        %v2299 = vsub.f32 %v2171, 0.6931472
        %v2300 = vsub.f32 %v2172, 0.6931472
        %v2301 = vsub.f32 %v2173, 0.6931472
        %v2302 = vsub.f32 %v2174, 0.6931472
        %v2303 = vsub.f32 %v2175, 0.6931472
        %v2304 = vsub.f32 %v2176, 0.6931472
        %v2305 = vsub.f32 %v2177, 0.6931472
        %v2306 = vsub.f32 %v2178, 0.6931472
        %v2307 = vsub.f32 %v2179, 0.6931472
        %v2308 = vsub.f32 %v2180, 0.6931472
        %v2309 = vsub.f32 %v2181, 0.6931472
        %v2310 = vsub.f32 %v2182, 0.6931472
        %v2311 = vsub.f32 %v2183, 0.6931472
        %v2312 = vsub.f32 %v2184, 0.6931472
        %v2313 = vsub.f32 %v2185, 0.6931472
        %2314 = vst [vmem:[%s135] sm:$0xff] %v2186
        %2315 = vst [vmem:[%s135 + $0x8] sm:$0xff] %v2187
        %2316 = vst [vmem:[%s135 + $0x10] sm:$0xff] %v2188
        %2317 = vst [vmem:[%s135 + $0x18] sm:$0xff] %v2189
        %2318 = vst [vmem:[%s135 + $0x20] sm:$0xff] %v2190
        %2319 = vst [vmem:[%s135 + $0x28] sm:$0xff] %v2191
        %2320 = vst [vmem:[%s135 + $0x30] sm:$0xff] %v2192
        %2321 = vst [vmem:[%s135 + $0x38] sm:$0xff] %v2193
        %2322 = vst [vmem:[%s135 + $0x40] sm:$0xff] %v2194
        %2323 = vst [vmem:[%s135 + $0x48] sm:$0xff] %v2195
        %2324 = vst [vmem:[%s135 + $0x50] sm:$0xff] %v2196
        %2325 = vst [vmem:[%s135 + $0x58] sm:$0xff] %v2197
        %2326 = vst [vmem:[%s135 + $0x60] sm:$0xff] %v2198
        %2327 = vst [vmem:[%s135 + $0x68] sm:$0xff] %v2199
        %2328 = vst [vmem:[%s135 + $0x70] sm:$0xff] %v2200
        %2329 = vst [vmem:[%s135 + $0x78] sm:$0xff] %v2201
        %2330 = vst [vmem:[%s135 + $0x80] sm:$0xff] %v2202
        %2331 = vst [vmem:[%s135 + $0x88] sm:$0xff] %v2203
        %2332 = vst [vmem:[%s135 + $0x90] sm:$0xff] %v2204
        %2333 = vst [vmem:[%s135 + $0x98] sm:$0xff] %v2205
        %2334 = vst [vmem:[%s135 + $0xa0] sm:$0xff] %v2206
        %2335 = vst [vmem:[%s135 + $0xa8] sm:$0xff] %v2207
        %2336 = vst [vmem:[%s135 + $0xb0] sm:$0xff] %v2208
        %2337 = vst [vmem:[%s135 + $0xb8] sm:$0xff] %v2209
        %2338 = vst [vmem:[%s135 + $0xc0] sm:$0xff] %v2210
        %2339 = vst [vmem:[%s135 + $0xc8] sm:$0xff] %v2211
        %2340 = vst [vmem:[%s135 + $0xd0] sm:$0xff] %v2212
        %2341 = vst [vmem:[%s135 + $0xd8] sm:$0xff] %v2213
        %2342 = vst [vmem:[%s135 + $0xe0] sm:$0xff] %v2214
        %2343 = vst [vmem:[%s135 + $0xe8] sm:$0xff] %v2215
        %2344 = vst [vmem:[%s135 + $0xf0] sm:$0xff] %v2216
        %2345 = vst [vmem:[%s135 + $0xf8] sm:$0xff] %v2217
        %2346 = vst [vmem:[%s135 + $0x100] sm:$0xff] %v2218
        %2347 = vst [vmem:[%s135 + $0x108] sm:$0xff] %v2219
        %2348 = vst [vmem:[%s135 + $0x110] sm:$0xff] %v2220
        %2349 = vst [vmem:[%s135 + $0x118] sm:$0xff] %v2221
        %2350 = vst [vmem:[%s135 + $0x120] sm:$0xff] %v2222
        %2351 = vst [vmem:[%s135 + $0x128] sm:$0xff] %v2223
        %2352 = vst [vmem:[%s135 + $0x130] sm:$0xff] %v2224
        %2353 = vst [vmem:[%s135 + $0x138] sm:$0xff] %v2225
        %2354 = vst [vmem:[%s135 + $0x140] sm:$0xff] %v2226
        %2355 = vst [vmem:[%s135 + $0x148] sm:$0xff] %v2227
        %2356 = vst [vmem:[%s135 + $0x150] sm:$0xff] %v2228
        %2357 = vst [vmem:[%s135 + $0x158] sm:$0xff] %v2229
        %2358 = vst [vmem:[%s135 + $0x160] sm:$0xff] %v2230
        %2359 = vst [vmem:[%s135 + $0x168] sm:$0xff] %v2231
        %2360 = vst [vmem:[%s135 + $0x170] sm:$0xff] %v2232
        %2361 = vst [vmem:[%s135 + $0x178] sm:$0xff] %v2233
        %2362 = vst [vmem:[%s135 + $0x180] sm:$0xff] %v2234
        %2363 = vst [vmem:[%s135 + $0x188] sm:$0xff] %v2235
        %2364 = vst [vmem:[%s135 + $0x190] sm:$0xff] %v2236
        %2365 = vst [vmem:[%s135 + $0x198] sm:$0xff] %v2237
        %2366 = vst [vmem:[%s135 + $0x1a0] sm:$0xff] %v2238
        %2367 = vst [vmem:[%s135 + $0x1a8] sm:$0xff] %v2239
        %2368 = vst [vmem:[%s135 + $0x1b0] sm:$0xff] %v2240
        %2369 = vst [vmem:[%s135 + $0x1b8] sm:$0xff] %v2241
        %2370 = vst [vmem:[%s135 + $0x1c0] sm:$0xff] %v2242
        %2371 = vst [vmem:[%s135 + $0x1c8] sm:$0xff] %v2243
        %2372 = vst [vmem:[%s135 + $0x1d0] sm:$0xff] %v2244
        %2373 = vst [vmem:[%s135 + $0x1d8] sm:$0xff] %v2245
        %2374 = vst [vmem:[%s135 + $0x1e0] sm:$0xff] %v2246
        %2375 = vst [vmem:[%s135 + $0x1e8] sm:$0xff] %v2247
        %2376 = vst [vmem:[%s135 + $0x1f0] sm:$0xff] %v2248
        %2377 = vst [vmem:[%s135 + $0x1f8] sm:$0xff] %v2249
        %2378 = vst [vmem:[%s135 + $0x200] sm:$0xff] %v2250
        %2379 = vst [vmem:[%s135 + $0x208] sm:$0xff] %v2251
        %2380 = vst [vmem:[%s135 + $0x210] sm:$0xff] %v2252
        %2381 = vst [vmem:[%s135 + $0x218] sm:$0xff] %v2253
        %2382 = vst [vmem:[%s135 + $0x220] sm:$0xff] %v2254
        %2383 = vst [vmem:[%s135 + $0x228] sm:$0xff] %v2255
        %2384 = vst [vmem:[%s135 + $0x230] sm:$0xff] %v2256
        %2385 = vst [vmem:[%s135 + $0x238] sm:$0xff] %v2257
        %2386 = vst [vmem:[%s135 + $0x240] sm:$0xff] %v2258
        %2387 = vst [vmem:[%s135 + $0x248] sm:$0xff] %v2259
        %2388 = vst [vmem:[%s135 + $0x250] sm:$0xff] %v2260
        %2389 = vst [vmem:[%s135 + $0x258] sm:$0xff] %v2261
        %2390 = vst [vmem:[%s135 + $0x260] sm:$0xff] %v2262
        %2391 = vst [vmem:[%s135 + $0x268] sm:$0xff] %v2263
        %2392 = vst [vmem:[%s135 + $0x270] sm:$0xff] %v2264
        %2393 = vst [vmem:[%s135 + $0x278] sm:$0xff] %v2265
        %2394 = vst [vmem:[%s135 + $0x280] sm:$0xff] %v2266
        %2395 = vst [vmem:[%s135 + $0x288] sm:$0xff] %v2267
        %2396 = vst [vmem:[%s135 + $0x290] sm:$0xff] %v2268
        %2397 = vst [vmem:[%s135 + $0x298] sm:$0xff] %v2269
        %2398 = vst [vmem:[%s135 + $0x2a0] sm:$0xff] %v2270
        %2399 = vst [vmem:[%s135 + $0x2a8] sm:$0xff] %v2271
        %2400 = vst [vmem:[%s135 + $0x2b0] sm:$0xff] %v2272
        %2401 = vst [vmem:[%s135 + $0x2b8] sm:$0xff] %v2273
        %2402 = vst [vmem:[%s135 + $0x2c0] sm:$0xff] %v2274
        %2403 = vst [vmem:[%s135 + $0x2c8] sm:$0xff] %v2275
        %2404 = vst [vmem:[%s135 + $0x2d0] sm:$0xff] %v2276
        %2405 = vst [vmem:[%s135 + $0x2d8] sm:$0xff] %v2277
        %2406 = vst [vmem:[%s135 + $0x2e0] sm:$0xff] %v2278
        %2407 = vst [vmem:[%s135 + $0x2e8] sm:$0xff] %v2279
        %2408 = vst [vmem:[%s135 + $0x2f0] sm:$0xff] %v2280
        %2409 = vst [vmem:[%s135 + $0x2f8] sm:$0xff] %v2281
        %2410 = vst [vmem:[%s135 + $0x300] sm:$0xff] %v2282
        %2411 = vst [vmem:[%s135 + $0x308] sm:$0xff] %v2283
        %2412 = vst [vmem:[%s135 + $0x310] sm:$0xff] %v2284
        %2413 = vst [vmem:[%s135 + $0x318] sm:$0xff] %v2285
        %2414 = vst [vmem:[%s135 + $0x320] sm:$0xff] %v2286
        %2415 = vst [vmem:[%s135 + $0x328] sm:$0xff] %v2287
        %2416 = vst [vmem:[%s135 + $0x330] sm:$0xff] %v2288
        %2417 = vst [vmem:[%s135 + $0x338] sm:$0xff] %v2289
        %2418 = vst [vmem:[%s135 + $0x340] sm:$0xff] %v2290
        %2419 = vst [vmem:[%s135 + $0x348] sm:$0xff] %v2291
        %2420 = vst [vmem:[%s135 + $0x350] sm:$0xff] %v2292
        %2421 = vst [vmem:[%s135 + $0x358] sm:$0xff] %v2293
        %2422 = vst [vmem:[%s135 + $0x360] sm:$0xff] %v2294
        %2423 = vst [vmem:[%s135 + $0x368] sm:$0xff] %v2295
        %2424 = vst [vmem:[%s135 + $0x370] sm:$0xff] %v2296
        %2425 = vst [vmem:[%s135 + $0x378] sm:$0xff] %v2297
        %2426 = vst [vmem:[%s135 + $0x380] sm:$0xff] %v2298
        %2427 = vst [vmem:[%s135 + $0x388] sm:$0xff] %v2299
        %2428 = vst [vmem:[%s135 + $0x390] sm:$0xff] %v2300
        %2429 = vst [vmem:[%s135 + $0x398] sm:$0xff] %v2301
        %2430 = vst [vmem:[%s135 + $0x3a0] sm:$0xff] %v2302
        %2431 = vst [vmem:[%s135 + $0x3a8] sm:$0xff] %v2303
        %2432 = vst [vmem:[%s135 + $0x3b0] sm:$0xff] %v2304
        %2433 = vst [vmem:[%s135 + $0x3b8] sm:$0xff] %v2305
        %2434 = vst [vmem:[%s135 + $0x3c0] sm:$0xff] %v2306
        %2435 = vst [vmem:[%s135 + $0x3c8] sm:$0xff] %v2307
        %2436 = vst [vmem:[%s135 + $0x3d0] sm:$0xff] %v2308
        %2437 = vst [vmem:[%s135 + $0x3d8] sm:$0xff] %v2309
        %2438 = vst [vmem:[%s135 + $0x3e0] sm:$0xff] %v2310
        %2439 = vst [vmem:[%s135 + $0x3e8] sm:$0xff] %v2311
        %2440 = vst [vmem:[%s135 + $0x3f0] sm:$0xff] %v2312
        %2441 = vst [vmem:[%s135 + $0x3f8] sm:$0xff] %v2313
        %s2442 = sand.u32 %s52, 1
        %s2443 = scalar_lea.sflag [#allocation4], %s2442
        %s2444 = sand.u32 %s52, 1
        %s2445 = smul.addr %s2444, 1024
        %s2446 = scalar_lea.vmem [#allocation5], %s2445
        // Predicated region
        $region29: #{tpu_custom_call.1} parent=23 // pred_check
          %p2447 = pneg %p62
        $region30: #{tpu_custom_call.1} parent=23 // pred_check_branch
          %2449 = sbr.rel (%p2447) target = $region32
        $region31: #{tpu_custom_call.1} parent=23 // pred_region
          %s2450 = smul.u32 4, %s18
          %s2452 = ssub.s32 16384, 16384
          %2453 = vsyncadd %s2443, %s2452
          %s2454 = smul.addr %s2450, 32
          %s2455 = smul.addr %s2454, 128
          %s2456 = scalar_lea.hbm %s1, %s2455
          %s2457 = sshll.u32 %s2446, 4
          %s2458 = int_to_ptr.vmem [resolvable:$true] %s2457
          %2463 = dma.vmem_to_hbm [thread:$0]  %s2458, 16384, %s2456, %s2443, 4096, 4096, 256
        $region32: #{tpu_custom_call.1} parent=23 // pred_fallthru
          _
      $region24: #{tpu_custom_call.1} parent=5 // pred_fallthru
        _
      %p2464 = scmp.le.s32.totalorder 2, %s13
      // Predicated region
      $region33: #{tpu_custom_call.1} parent=5 // pred_check
        %p2465 = pneg %p2464
      $region34: #{tpu_custom_call.1} parent=5 // pred_check_branch
        %2467 = sbr.rel (%p2465) target = $region36
      $region35: #{tpu_custom_call.1} parent=5 // pred_region
        %s2468 = ssub.s32 %s13, 2
        // Predicated region
        $region37: #{tpu_custom_call.1} parent=35 // pred_check
          %p2469 = pneg %p68
        $region38: #{tpu_custom_call.1} parent=35 // pred_check_branch
          %2471 = sbr.rel (%p2469) target = $region40
        $region39: #{tpu_custom_call.1} parent=35 // pred_region
          %s2472 = sand.u32 %s53, 1
          %s2473 = scalar_lea.sflag [#allocation4], %s2472
          %s2474 = sand.u32 %s53, 1
          %s2475 = smul.addr %s2474, 1024
          %s2476 = scalar_lea.vmem [#allocation5], %s2475
          %2477 = dma.done %s2473, 16384
        $region40: #{tpu_custom_call.1} parent=35 // pred_fallthru
          _
      $region36: #{tpu_custom_call.1} parent=5 // pred_fallthru
        _
    $region6: #{tpu_custom_call.1} parent=1 // loop_footer
      %s17 = sadd.s32 1, %s13
    $region7: #{tpu_custom_call.1} parent=1 // loop_footer_branch
      %12 = sbr.rel target = $region3
    $region8: #{tpu_custom_call.1} parent=1 // loop_exit
      _
    %2478 = vsyncpa [#allocation3], 1
    %s2479 = scalar_lea.sflag [#allocation3], 1
    %2480 = vsyncpa %s2479, 1
    %2481 = vsyncpa [#allocation4], 1
    %s2482 = scalar_lea.sflag [#allocation4], 1
    %2483 = vsyncpa %s2482, 1

</llo_original>
